<compile_context>
chip_gen: v6e
topology: v6e:2x2x1
jax: 0.10.0
libtpu: 0.0.40
codegen_flags: <defaults>
</compile_context>

<pallas_src>
import functools
import math

import jax
import jax.numpy as jnp
from jax.experimental import pallas as pl
from jax.experimental.pallas import tpu as pltpu

# ----------------------------- configuration --------------------------------
THETA_DIM = 3        # D : parameter-space dimensionality
X_DIM = 5            # L : observation-space dimensionality
IN_DIM = THETA_DIM + X_DIM                    # W = D + L  (fused input width)
HIDDEN = 64          # zuko MAF default hidden_features=(64, 64)
N_TRANSFORMS = 3     # zuko MAF default transforms=3
LOG_SLOPE = abs(math.log(1e-3))               # MonotonicAffineTransform slope=1e-3
LOG_2PI = math.log(2.0 * math.pi)


def _round_up(n, m):
    return ((n + m - 1) // m) * m


# ----------------------------- parameter setup ------------------------------
def _made_masks(order, x_dim, hidden):
    """MADE masks matching zuko's MaskedMLP construction (context > 0)."""
    d = order.shape[0]
    hid_deg = jnp.arange(hidden) % d
    m1_theta = (hid_deg[None, :] > order[:, None]).astype(jnp.float32)   # (D, H)
    m1_x = jnp.ones((x_dim, hidden), jnp.float32)                        # (L, H)
    m2 = (hid_deg[None, :] >= hid_deg[:, None]).astype(jnp.float32)      # (H, H)
    m3 = (order[None, :] >= hid_deg[:, None]).astype(jnp.float32)        # (H, D)
    return m1_theta, m1_x, m2, m3


def init_params(key):
    """Deterministic synthetic parameters, masked, fused & stacked over transforms.

    Returns (w1, b1, w2, b2, w3, b3) with
      w1 : (T, W, H)    bf16   fused [theta | x] -> hidden1
      w2 : (T, H, H)    bf16   hidden1 -> hidden2
      w3 : (T, H, 2W)   bf16   hidden2 -> [shift(pad to W) | raw_scale(pad to W)]
      b* : f32 biases (pad lanes exactly zero so x lanes pass through unchanged)
    """
    D, L, H, T, W = THETA_DIM, X_DIM, HIDDEN, N_TRANSFORMS, IN_DIM
    w1_l, b1_l, w2_l, b2_l, w3_l, b3_l = [], [], [], [], [], []
    keys = jax.random.split(key, T)
    for t in range(T):
        # zuko MAF: alternating ascending / descending orders
        order = jnp.arange(D) if t % 2 == 0 else jnp.arange(D)[::-1]
        m1t, m1x, m2, m3 = _made_masks(order, L, H)
        k1, k2, k3, kb1, kb2, kb3 = jax.random.split(keys[t], 6)
        s1 = 1.0 / math.sqrt(D + L)
        s2 = 1.0 / math.sqrt(H)

        w1 = jax.random.uniform(k1, (W, H), jnp.float32, -s1, s1)
        m1 = jnp.concatenate([m1t, m1x], axis=0)                    # (W, H)
        w1_l.append(w1 * m1)
        b1_l.append(jax.random.uniform(kb1, (1, H), jnp.float32, -s1, s1))

        w2_l.append(jax.random.uniform(k2, (H, H), jnp.float32, -s2, s2) * m2)
        b2_l.append(jax.random.uniform(kb2, (1, H), jnp.float32, -s2, s2))

        # final layer: zuko interleaves phi = [f0_shift, f0_scale, f1_shift, ...]
        w3 = jax.random.uniform(k3, (H, 2 * D), jnp.float32, -s2, s2)
        b3 = jax.random.uniform(kb3, (1, 2 * D), jnp.float32, -s2, s2)
        w3s = w3[:, 0::2] * m3                                       # (H, D) shift
        w3c = w3[:, 1::2] * m3                                       # (H, D) raw scale
        b3s, b3c = b3[:, 0::2], b3[:, 1::2]
        wpad = jnp.zeros((H, L), jnp.float32)
        bpad = jnp.zeros((1, L), jnp.float32)
        # pad lanes (the x lanes) get shift=0, raw_scale=0 -> identity passthrough
        w3_l.append(jnp.concatenate([w3s, wpad, w3c, wpad], axis=1))   # (H, 2W)
        b3_l.append(jnp.concatenate([b3s, bpad, b3c, bpad], axis=1))   # (1, 2W)

    w1 = jnp.stack(w1_l).astype(jnp.bfloat16)
    w2 = jnp.stack(w2_l).astype(jnp.bfloat16)
    w3 = jnp.stack(w3_l).astype(jnp.bfloat16)
    b1 = jnp.stack(b1_l)
    b2 = jnp.stack(b2_l)
    b3 = jnp.stack(b3_l)
    return (w1, b1, w2, b2, w3, b3)


# -------------------------------- the kernel --------------------------------
def npe_kernel(inp_ref, w1_ref, b1_ref, w2_ref, b2_ref, w3_ref, b3_ref, out_ref):
    W = IN_DIM
    zc = inp_ref[...].astype(jnp.float32)                 # (TB, W): [z | x]
    ls_acc = jnp.zeros_like(zc)                           # accumulated log-scales

    for t in range(N_TRANSFORMS):                         # static unrolled loop
        # MaskedMLP hyper-net on concat([z, x]); single fused layer-1 matmul.
        # bf16 matmul operands, f32 accumulation; elementwise math stays f32.
        h1 = jnp.dot(zc.astype(jnp.bfloat16), w1_ref[t],
                     preferred_element_type=jnp.float32) + b1_ref[t]
        h1 = jnp.maximum(h1, 0.0)
        h2 = jnp.dot(h1.astype(jnp.bfloat16), w2_ref[t],
                     preferred_element_type=jnp.float32) + b2_ref[t]
        h2 = jnp.maximum(h2, 0.0)
        y = jnp.dot(h2.astype(jnp.bfloat16), w3_ref[t],
                    preferred_element_type=jnp.float32) + b3_ref[t]   # (TB, 2W)
        shift = y[:, :W]                                  # (TB, W), pad lanes = 0
        sc = y[:, W:]                                     # (TB, W), pad lanes = 0
        # MonotonicAffineTransform: soft-clamped log-scale
        log_scale = sc / (1.0 + jnp.abs(sc) * (1.0 / LOG_SLOPE))
        ls_acc = ls_acc + log_scale
        # x lanes: * exp(0) + 0  ->  context carried through unchanged
        zc = zc * jnp.exp(log_scale) + shift

    # standard-normal base log-prob + sum of log|det J|, single lane-reduce,
    # restricted to the theta lanes.
    lane = jax.lax.broadcasted_iota(jnp.int32, zc.shape, 1)
    terms = jnp.where(lane < THETA_DIM,
                      -0.5 * zc * zc - 0.5 * LOG_2PI + ls_acc,
                      0.0)
    lp = jnp.sum(terms, axis=-1)                          # (TB,)
    out_ref[...] = lp.reshape(1, -1)                      # lane-dense (1, TB) store


# ------------------------------- pallas wrapper ------------------------------
def _full_spec(arr):
    zeros = (0,) * arr.ndim
    return pl.BlockSpec(arr.shape, lambda i: zeros)


@functools.partial(jax.jit, static_argnames=("tile_b",))
def _pallas_log_prob(inp, params, tile_b):
    B, W = inp.shape
    w1, b1, w2, b2, w3, b3 = params
    grid = (B // tile_b,)
    out = pl.pallas_call(
        npe_kernel,
        out_shape=jax.ShapeDtypeStruct((1, B), jnp.float32),
        grid_spec=pltpu.PrefetchScalarGridSpec(
            num_scalar_prefetch=0,
            grid=grid,
            in_specs=[
                pl.BlockSpec((tile_b, W), lambda i: (i, 0)),
                _full_spec(w1), _full_spec(b1),
                _full_spec(w2), _full_spec(b2),
                _full_spec(w3), _full_spec(b3),
            ],
            out_specs=pl.BlockSpec((1, tile_b), lambda i: (0, i)),
        ),
        compiler_params=pltpu.CompilerParams(dimension_semantics=("parallel",)),
    )(inp, w1, b1, w2, b2, w3, b3)
    return out


def npe_forward(theta, x, params, *, tile_b=512):
    """log p(theta | x); theta: (*, D), x: (*, L) -> (*,)  (NPE.forward)."""
    D, L = theta.shape[-1], x.shape[-1]
    batch = jnp.broadcast_shapes(theta.shape[:-1], x.shape[:-1])   # broadcast(.., ignore=1)
    theta = jnp.broadcast_to(theta, batch + (D,)).reshape(-1, D).astype(jnp.float32)
    x = jnp.broadcast_to(x, batch + (L,)).reshape(-1, L).astype(jnp.float32)
    inp = jnp.concatenate([theta, x], axis=-1)                     # (B, D+L)
    B = inp.shape[0]
    # tile is a multiple of 128 (lane-dense output store) but no larger than needed
    tb = min(_round_up(tile_b, 128), _round_up(B, 128))
    Bp = _round_up(B, tb)
    if Bp != B:
        inp = jnp.pad(inp, ((0, Bp - B), (0, 0)))
    out = _pallas_log_prob(inp, params, tb)                        # (1, Bp)
    return out[0, :B].reshape(batch)


# ------------------------------ pure-JAX reference ---------------------------
def npe_forward_ref(theta, x, params):
    w1, b1, w2, b2, w3, b3 = [p.astype(jnp.float32) for p in params]
    D, W = THETA_DIM, IN_DIM
    z, ladj = theta, 0.0
    for t in range(N_TRANSFORMS):
        zc = jnp.concatenate([z, x], axis=-1)
        h1 = jax.nn.relu(zc @ w1[t] + b1[t])
        h2 = jax.nn.relu(h1 @ w2[t] + b2[t])
        y = h2 @ w3[t] + b3[t]
        shift = y[:, :D]
        sc = y[:, W:W + D]
        log_scale = sc / (1.0 + jnp.abs(sc) / LOG_SLOPE)
        ladj = ladj + jnp.sum(log_scale, axis=-1)
        z = z * jnp.exp(log_scale) + shift
    return jnp.sum(-0.5 * z * z - 0.5 * LOG_2PI, axis=-1) + ladj


# ----------------------------------- main ------------------------------------
if __name__ == "__main__":
    key = jax.random.PRNGKey(0)
    kp, kt, kx = jax.random.split(key, 3)
    params = init_params(kp)

    B = 16
    theta = jax.random.normal(kt, (B, THETA_DIM), jnp.float32)
    x = jax.random.normal(kx, (B, X_DIM), jnp.float32)

    log_prob = jax.block_until_ready(npe_forward(theta, x, params))
    ref = npe_forward_ref(theta, x, params)

    assert log_prob.shape == (B,), log_prob.shape
    # slightly relaxed tolerance: matmul operands are bf16 (MXU-native), accum f32
    assert jnp.allclose(log_prob, ref, rtol=2e-2, atol=2e-2), (log_prob, ref)
    print("KERNEL_OK")
</pallas_src>

<mosaic_0001>
module attributes {stable_mosaic.version = 11 : i64} {
  func.func @npe_kernel(%arg0: i32, %arg1: memref<128x8xf32, #tpu.memory_space<vmem>>, %arg2: memref<3x8x64xbf16, #tpu.memory_space<vmem>>, %arg3: memref<3x1x64xf32, #tpu.memory_space<vmem>>, %arg4: memref<3x64x64xbf16, #tpu.memory_space<vmem>>, %arg5: memref<3x1x64xf32, #tpu.memory_space<vmem>>, %arg6: memref<3x64x16xbf16, #tpu.memory_space<vmem>>, %arg7: memref<3x1x16xf32, #tpu.memory_space<vmem>>, %arg8: memref<1x128xf32, #tpu.memory_space<vmem>>) attributes {dimension_semantics = [#tpu.dimension_semantics<parallel>], iteration_bounds = array<i64: 1>, scalar_prefetch = 0 : i64, scratch_operands = 0 : i64, tpu.core_type = #tpu.core_type<tc>, window_params = [{transform_indices = @transform_0, window_bounds = array<i64: 128, 8>}, {pipeline_mode = #tpu.pipeline_mode<synchronous>, transform_indices = @transform_1, window_bounds = array<i64: 3, 8, 64>}, {pipeline_mode = #tpu.pipeline_mode<synchronous>, transform_indices = @transform_2, window_bounds = array<i64: 3, 1, 64>}, {pipeline_mode = #tpu.pipeline_mode<synchronous>, transform_indices = @transform_3, window_bounds = array<i64: 3, 64, 64>}, {pipeline_mode = #tpu.pipeline_mode<synchronous>, transform_indices = @transform_4, window_bounds = array<i64: 3, 1, 64>}, {pipeline_mode = #tpu.pipeline_mode<synchronous>, transform_indices = @transform_5, window_bounds = array<i64: 3, 64, 16>}, {pipeline_mode = #tpu.pipeline_mode<synchronous>, transform_indices = @transform_6, window_bounds = array<i64: 3, 1, 16>}, {transform_indices = @transform_7, window_bounds = array<i64: 1, 128>}]} {
    %c0 = arith.constant 0 : index
    %c0_0 = arith.constant 0 : index
    %0 = vector.load %arg1[%c0, %c0_0] : memref<128x8xf32, #tpu.memory_space<vmem>>, vector<128x8xf32>
    %cst = arith.constant 0.000000e+00 : f32
    %1 = vector.broadcast %cst : f32 to vector<128x8xf32>
    %2 = arith.truncf %0 : vector<128x8xf32> to vector<128x8xbf16>
    %c0_1 = arith.constant 0 : index
    %c0_2 = arith.constant 0 : index
    %c0_3 = arith.constant 0 : index
    %3 = vector.load %arg2[%c0_1, %c0_2, %c0_3] : memref<3x8x64xbf16, #tpu.memory_space<vmem>>, vector<1x8x64xbf16>
    %4 = vector.shape_cast %3 : vector<1x8x64xbf16> to vector<8x64xbf16>
    %cst_4 = arith.constant dense<0.000000e+00> : vector<128x64xf32>
    %5 = tpu.matmul %2, %4, %cst_4 {dimension_numbers = #tpu.dot_dimension_numbers<[1], [0], [0], [1], [0, 0, 1, 1], [], []>} : vector<128x8xbf16>, vector<8x64xbf16>, vector<128x64xf32> -> vector<128x64xf32>
    %c0_5 = arith.constant 0 : index
    %c0_6 = arith.constant 0 : index
    %c0_7 = arith.constant 0 : index
    %6 = vector.load %arg3[%c0_5, %c0_6, %c0_7] : memref<3x1x64xf32, #tpu.memory_space<vmem>>, vector<1x1x64xf32>
    %7 = vector.shape_cast %6 : vector<1x1x64xf32> to vector<1x64xf32>
    %8 = vector.broadcast %7 : vector<1x64xf32> to vector<128x64xf32>
    %9 = arith.addf %5, %8 : vector<128x64xf32>
    %cst_8 = arith.constant 0.000000e+00 : f32
    %10 = vector.broadcast %cst_8 : f32 to vector<128x64xf32>
    %11 = arith.maximumf %9, %10 : vector<128x64xf32>
    %12 = arith.truncf %11 : vector<128x64xf32> to vector<128x64xbf16>
    %c0_9 = arith.constant 0 : index
    %c0_10 = arith.constant 0 : index
    %c0_11 = arith.constant 0 : index
    %13 = vector.load %arg4[%c0_9, %c0_10, %c0_11] : memref<3x64x64xbf16, #tpu.memory_space<vmem>>, vector<1x64x64xbf16>
    %14 = vector.shape_cast %13 : vector<1x64x64xbf16> to vector<64x64xbf16>
    %cst_12 = arith.constant dense<0.000000e+00> : vector<128x64xf32>
    %15 = tpu.matmul %12, %14, %cst_12 {dimension_numbers = #tpu.dot_dimension_numbers<[1], [0], [0], [1], [0, 0, 1, 1], [], []>} : vector<128x64xbf16>, vector<64x64xbf16>, vector<128x64xf32> -> vector<128x64xf32>
    %c0_13 = arith.constant 0 : index
    %c0_14 = arith.constant 0 : index
    %c0_15 = arith.constant 0 : index
    %16 = vector.load %arg5[%c0_13, %c0_14, %c0_15] : memref<3x1x64xf32, #tpu.memory_space<vmem>>, vector<1x1x64xf32>
    %17 = vector.shape_cast %16 : vector<1x1x64xf32> to vector<1x64xf32>
    %18 = vector.broadcast %17 : vector<1x64xf32> to vector<128x64xf32>
    %19 = arith.addf %15, %18 : vector<128x64xf32>
    %cst_16 = arith.constant 0.000000e+00 : f32
    %20 = vector.broadcast %cst_16 : f32 to vector<128x64xf32>
    %21 = arith.maximumf %19, %20 : vector<128x64xf32>
    %22 = arith.truncf %21 : vector<128x64xf32> to vector<128x64xbf16>
    %c0_17 = arith.constant 0 : index
    %c0_18 = arith.constant 0 : index
    %c0_19 = arith.constant 0 : index
    %23 = vector.load %arg6[%c0_17, %c0_18, %c0_19] : memref<3x64x16xbf16, #tpu.memory_space<vmem>>, vector<1x64x16xbf16>
    %24 = vector.shape_cast %23 : vector<1x64x16xbf16> to vector<64x16xbf16>
    %cst_20 = arith.constant dense<0.000000e+00> : vector<128x16xf32>
    %25 = tpu.matmul %22, %24, %cst_20 {dimension_numbers = #tpu.dot_dimension_numbers<[1], [0], [0], [1], [0, 0, 1, 1], [], []>} : vector<128x64xbf16>, vector<64x16xbf16>, vector<128x16xf32> -> vector<128x16xf32>
    %c0_21 = arith.constant 0 : index
    %c0_22 = arith.constant 0 : index
    %c0_23 = arith.constant 0 : index
    %26 = vector.load %arg7[%c0_21, %c0_22, %c0_23] : memref<3x1x16xf32, #tpu.memory_space<vmem>>, vector<1x1x16xf32>
    %27 = vector.shape_cast %26 : vector<1x1x16xf32> to vector<1x16xf32>
    %28 = vector.broadcast %27 : vector<1x16xf32> to vector<128x16xf32>
    %29 = arith.addf %25, %28 : vector<128x16xf32>
    %30 = vector.extract_strided_slice %29 {offsets = [0, 0], sizes = [128, 8], strides = [1, 1]} : vector<128x16xf32> to vector<128x8xf32>
    %31 = vector.extract_strided_slice %29 {offsets = [0, 8], sizes = [128, 8], strides = [1, 1]} : vector<128x16xf32> to vector<128x8xf32>
    %32 = math.absf %31 : vector<128x8xf32>
    %cst_24 = arith.constant 0.144764826 : f32
    %33 = vector.broadcast %cst_24 : f32 to vector<128x8xf32>
    %34 = arith.mulf %32, %33 : vector<128x8xf32>
    %cst_25 = arith.constant 1.000000e+00 : f32
    %35 = vector.broadcast %cst_25 : f32 to vector<128x8xf32>
    %36 = arith.addf %35, %34 : vector<128x8xf32>
    %37 = arith.divf %31, %36 : vector<128x8xf32>
    %38 = arith.addf %1, %37 : vector<128x8xf32>
    %39 = math.exp %37 : vector<128x8xf32>
    %40 = arith.mulf %0, %39 : vector<128x8xf32>
    %41 = arith.addf %40, %30 : vector<128x8xf32>
    %42 = arith.truncf %41 : vector<128x8xf32> to vector<128x8xbf16>
    %c1 = arith.constant 1 : index
    %c0_26 = arith.constant 0 : index
    %c0_27 = arith.constant 0 : index
    %43 = vector.load %arg2[%c1, %c0_26, %c0_27] : memref<3x8x64xbf16, #tpu.memory_space<vmem>>, vector<1x8x64xbf16>
    %44 = vector.shape_cast %43 : vector<1x8x64xbf16> to vector<8x64xbf16>
    %cst_28 = arith.constant dense<0.000000e+00> : vector<128x64xf32>
    %45 = tpu.matmul %42, %44, %cst_28 {dimension_numbers = #tpu.dot_dimension_numbers<[1], [0], [0], [1], [0, 0, 1, 1], [], []>} : vector<128x8xbf16>, vector<8x64xbf16>, vector<128x64xf32> -> vector<128x64xf32>
    %c1_29 = arith.constant 1 : index
    %c0_30 = arith.constant 0 : index
    %c0_31 = arith.constant 0 : index
    %46 = vector.load %arg3[%c1_29, %c0_30, %c0_31] : memref<3x1x64xf32, #tpu.memory_space<vmem>>, vector<1x1x64xf32>
    %47 = vector.shape_cast %46 : vector<1x1x64xf32> to vector<1x64xf32>
    %48 = vector.broadcast %47 : vector<1x64xf32> to vector<128x64xf32>
    %49 = arith.addf %45, %48 : vector<128x64xf32>
    %cst_32 = arith.constant 0.000000e+00 : f32
    %50 = vector.broadcast %cst_32 : f32 to vector<128x64xf32>
    %51 = arith.maximumf %49, %50 : vector<128x64xf32>
    %52 = arith.truncf %51 : vector<128x64xf32> to vector<128x64xbf16>
    %c1_33 = arith.constant 1 : index
    %c0_34 = arith.constant 0 : index
    %c0_35 = arith.constant 0 : index
    %53 = vector.load %arg4[%c1_33, %c0_34, %c0_35] : memref<3x64x64xbf16, #tpu.memory_space<vmem>>, vector<1x64x64xbf16>
    %54 = vector.shape_cast %53 : vector<1x64x64xbf16> to vector<64x64xbf16>
    %cst_36 = arith.constant dense<0.000000e+00> : vector<128x64xf32>
    %55 = tpu.matmul %52, %54, %cst_36 {dimension_numbers = #tpu.dot_dimension_numbers<[1], [0], [0], [1], [0, 0, 1, 1], [], []>} : vector<128x64xbf16>, vector<64x64xbf16>, vector<128x64xf32> -> vector<128x64xf32>
    %c1_37 = arith.constant 1 : index
    %c0_38 = arith.constant 0 : index
    %c0_39 = arith.constant 0 : index
    %56 = vector.load %arg5[%c1_37, %c0_38, %c0_39] : memref<3x1x64xf32, #tpu.memory_space<vmem>>, vector<1x1x64xf32>
    %57 = vector.shape_cast %56 : vector<1x1x64xf32> to vector<1x64xf32>
    %58 = vector.broadcast %57 : vector<1x64xf32> to vector<128x64xf32>
    %59 = arith.addf %55, %58 : vector<128x64xf32>
    %cst_40 = arith.constant 0.000000e+00 : f32
    %60 = vector.broadcast %cst_40 : f32 to vector<128x64xf32>
    %61 = arith.maximumf %59, %60 : vector<128x64xf32>
    %62 = arith.truncf %61 : vector<128x64xf32> to vector<128x64xbf16>
    %c1_41 = arith.constant 1 : index
    %c0_42 = arith.constant 0 : index
    %c0_43 = arith.constant 0 : index
    %63 = vector.load %arg6[%c1_41, %c0_42, %c0_43] : memref<3x64x16xbf16, #tpu.memory_space<vmem>>, vector<1x64x16xbf16>
    %64 = vector.shape_cast %63 : vector<1x64x16xbf16> to vector<64x16xbf16>
    %cst_44 = arith.constant dense<0.000000e+00> : vector<128x16xf32>
    %65 = tpu.matmul %62, %64, %cst_44 {dimension_numbers = #tpu.dot_dimension_numbers<[1], [0], [0], [1], [0, 0, 1, 1], [], []>} : vector<128x64xbf16>, vector<64x16xbf16>, vector<128x16xf32> -> vector<128x16xf32>
    %c1_45 = arith.constant 1 : index
    %c0_46 = arith.constant 0 : index
    %c0_47 = arith.constant 0 : index
    %66 = vector.load %arg7[%c1_45, %c0_46, %c0_47] : memref<3x1x16xf32, #tpu.memory_space<vmem>>, vector<1x1x16xf32>
    %67 = vector.shape_cast %66 : vector<1x1x16xf32> to vector<1x16xf32>
    %68 = vector.broadcast %67 : vector<1x16xf32> to vector<128x16xf32>
    %69 = arith.addf %65, %68 : vector<128x16xf32>
    %70 = vector.extract_strided_slice %69 {offsets = [0, 0], sizes = [128, 8], strides = [1, 1]} : vector<128x16xf32> to vector<128x8xf32>
    %71 = vector.extract_strided_slice %69 {offsets = [0, 8], sizes = [128, 8], strides = [1, 1]} : vector<128x16xf32> to vector<128x8xf32>
    %72 = math.absf %71 : vector<128x8xf32>
    %cst_48 = arith.constant 0.144764826 : f32
    %73 = vector.broadcast %cst_48 : f32 to vector<128x8xf32>
    %74 = arith.mulf %72, %73 : vector<128x8xf32>
    %cst_49 = arith.constant 1.000000e+00 : f32
    %75 = vector.broadcast %cst_49 : f32 to vector<128x8xf32>
    %76 = arith.addf %75, %74 : vector<128x8xf32>
    %77 = arith.divf %71, %76 : vector<128x8xf32>
    %78 = arith.addf %38, %77 : vector<128x8xf32>
    %79 = math.exp %77 : vector<128x8xf32>
    %80 = arith.mulf %41, %79 : vector<128x8xf32>
    %81 = arith.addf %80, %70 : vector<128x8xf32>
    %82 = arith.truncf %81 : vector<128x8xf32> to vector<128x8xbf16>
    %c2 = arith.constant 2 : index
    %c0_50 = arith.constant 0 : index
    %c0_51 = arith.constant 0 : index
    %83 = vector.load %arg2[%c2, %c0_50, %c0_51] : memref<3x8x64xbf16, #tpu.memory_space<vmem>>, vector<1x8x64xbf16>
    %84 = vector.shape_cast %83 : vector<1x8x64xbf16> to vector<8x64xbf16>
    %cst_52 = arith.constant dense<0.000000e+00> : vector<128x64xf32>
    %85 = tpu.matmul %82, %84, %cst_52 {dimension_numbers = #tpu.dot_dimension_numbers<[1], [0], [0], [1], [0, 0, 1, 1], [], []>} : vector<128x8xbf16>, vector<8x64xbf16>, vector<128x64xf32> -> vector<128x64xf32>
    %c2_53 = arith.constant 2 : index
    %c0_54 = arith.constant 0 : index
    %c0_55 = arith.constant 0 : index
    %86 = vector.load %arg3[%c2_53, %c0_54, %c0_55] : memref<3x1x64xf32, #tpu.memory_space<vmem>>, vector<1x1x64xf32>
    %87 = vector.shape_cast %86 : vector<1x1x64xf32> to vector<1x64xf32>
    %88 = vector.broadcast %87 : vector<1x64xf32> to vector<128x64xf32>
    %89 = arith.addf %85, %88 : vector<128x64xf32>
    %cst_56 = arith.constant 0.000000e+00 : f32
    %90 = vector.broadcast %cst_56 : f32 to vector<128x64xf32>
    %91 = arith.maximumf %89, %90 : vector<128x64xf32>
    %92 = arith.truncf %91 : vector<128x64xf32> to vector<128x64xbf16>
    %c2_57 = arith.constant 2 : index
    %c0_58 = arith.constant 0 : index
    %c0_59 = arith.constant 0 : index
    %93 = vector.load %arg4[%c2_57, %c0_58, %c0_59] : memref<3x64x64xbf16, #tpu.memory_space<vmem>>, vector<1x64x64xbf16>
    %94 = vector.shape_cast %93 : vector<1x64x64xbf16> to vector<64x64xbf16>
    %cst_60 = arith.constant dense<0.000000e+00> : vector<128x64xf32>
    %95 = tpu.matmul %92, %94, %cst_60 {dimension_numbers = #tpu.dot_dimension_numbers<[1], [0], [0], [1], [0, 0, 1, 1], [], []>} : vector<128x64xbf16>, vector<64x64xbf16>, vector<128x64xf32> -> vector<128x64xf32>
    %c2_61 = arith.constant 2 : index
    %c0_62 = arith.constant 0 : index
    %c0_63 = arith.constant 0 : index
    %96 = vector.load %arg5[%c2_61, %c0_62, %c0_63] : memref<3x1x64xf32, #tpu.memory_space<vmem>>, vector<1x1x64xf32>
    %97 = vector.shape_cast %96 : vector<1x1x64xf32> to vector<1x64xf32>
    %98 = vector.broadcast %97 : vector<1x64xf32> to vector<128x64xf32>
    %99 = arith.addf %95, %98 : vector<128x64xf32>
    %cst_64 = arith.constant 0.000000e+00 : f32
    %100 = vector.broadcast %cst_64 : f32 to vector<128x64xf32>
    %101 = arith.maximumf %99, %100 : vector<128x64xf32>
    %102 = arith.truncf %101 : vector<128x64xf32> to vector<128x64xbf16>
    %c2_65 = arith.constant 2 : index
    %c0_66 = arith.constant 0 : index
    %c0_67 = arith.constant 0 : index
    %103 = vector.load %arg6[%c2_65, %c0_66, %c0_67] : memref<3x64x16xbf16, #tpu.memory_space<vmem>>, vector<1x64x16xbf16>
    %104 = vector.shape_cast %103 : vector<1x64x16xbf16> to vector<64x16xbf16>
    %cst_68 = arith.constant dense<0.000000e+00> : vector<128x16xf32>
    %105 = tpu.matmul %102, %104, %cst_68 {dimension_numbers = #tpu.dot_dimension_numbers<[1], [0], [0], [1], [0, 0, 1, 1], [], []>} : vector<128x64xbf16>, vector<64x16xbf16>, vector<128x16xf32> -> vector<128x16xf32>
    %c2_69 = arith.constant 2 : index
    %c0_70 = arith.constant 0 : index
    %c0_71 = arith.constant 0 : index
    %106 = vector.load %arg7[%c2_69, %c0_70, %c0_71] : memref<3x1x16xf32, #tpu.memory_space<vmem>>, vector<1x1x16xf32>
    %107 = vector.shape_cast %106 : vector<1x1x16xf32> to vector<1x16xf32>
    %108 = vector.broadcast %107 : vector<1x16xf32> to vector<128x16xf32>
    %109 = arith.addf %105, %108 : vector<128x16xf32>
    %110 = vector.extract_strided_slice %109 {offsets = [0, 0], sizes = [128, 8], strides = [1, 1]} : vector<128x16xf32> to vector<128x8xf32>
    %111 = vector.extract_strided_slice %109 {offsets = [0, 8], sizes = [128, 8], strides = [1, 1]} : vector<128x16xf32> to vector<128x8xf32>
    %112 = math.absf %111 : vector<128x8xf32>
    %cst_72 = arith.constant 0.144764826 : f32
    %113 = vector.broadcast %cst_72 : f32 to vector<128x8xf32>
    %114 = arith.mulf %112, %113 : vector<128x8xf32>
    %cst_73 = arith.constant 1.000000e+00 : f32
    %115 = vector.broadcast %cst_73 : f32 to vector<128x8xf32>
    %116 = arith.addf %115, %114 : vector<128x8xf32>
    %117 = arith.divf %111, %116 : vector<128x8xf32>
    %118 = arith.addf %78, %117 : vector<128x8xf32>
    %119 = math.exp %117 : vector<128x8xf32>
    %120 = arith.mulf %81, %119 : vector<128x8xf32>
    %121 = arith.addf %120, %110 : vector<128x8xf32>
    %122 = tpu.iota {dimensions = array<i32: 1>} : vector<128x8xi32>
    %c3_i32 = arith.constant 3 : i32
    %123 = vector.broadcast %c3_i32 : i32 to vector<128x8xi32>
    %124 = arith.cmpi slt, %122, %123 : vector<128x8xi32>
    %cst_74 = arith.constant -5.000000e-01 : f32
    %125 = vector.broadcast %cst_74 : f32 to vector<128x8xf32>
    %126 = arith.mulf %125, %121 : vector<128x8xf32>
    %127 = arith.mulf %126, %121 : vector<128x8xf32>
    %cst_75 = arith.constant 0.918938517 : f32
    %128 = vector.broadcast %cst_75 : f32 to vector<128x8xf32>
    %129 = arith.subf %127, %128 : vector<128x8xf32>
    %130 = arith.addf %129, %118 : vector<128x8xf32>
    %cst_76 = arith.constant 0.000000e+00 : f32
    %131 = vector.broadcast %cst_76 : f32 to vector<128x8xf32>
    %132 = arith.select %124, %130, %131 : vector<128x8xi1>, vector<128x8xf32>
    %cst_77 = arith.constant dense<0.000000e+00> : vector<128xf32>
    %133 = vector.multi_reduction <add>, %132, %cst_77 [1] : vector<128x8xf32> to vector<128xf32>
    %134 = vector.shape_cast %133 : vector<128xf32> to vector<1x128xf32>
    %c0_78 = arith.constant 0 : index
    %c0_79 = arith.constant 0 : index
    %135 = vector.load %arg8[%c0_78, %c0_79] : memref<1x128xf32, #tpu.memory_space<vmem>>, vector<1x128xf32>
    tpu.vector_store %arg8[%c0_78, %c0_79], %134 {strides = array<i32>} : memref<1x128xf32, #tpu.memory_space<vmem>>, vector<1x128xf32>,
    return
  }
  func.func @transform_0(%arg0: i32) -> (i32, i32) {
    %c0_i32 = arith.constant 0 : i32
    %c0_i32_0 = arith.constant 0 : i32
    return %arg0, %c0_i32 : i32, i32
  }
  func.func @transform_1(%arg0: i32) -> (i32, i32, i32) {
    %c0_i32 = arith.constant 0 : i32
    %c0_i32_0 = arith.constant 0 : i32
    %c0_i32_1 = arith.constant 0 : i32
    %c0_i32_2 = arith.constant 0 : i32
    return %c0_i32, %c0_i32_0, %c0_i32_1 : i32, i32, i32
  }
  func.func @transform_2(%arg0: i32) -> (i32, i32, i32) {
    %c0_i32 = arith.constant 0 : i32
    %c0_i32_0 = arith.constant 0 : i32
    %c0_i32_1 = arith.constant 0 : i32
    %c0_i32_2 = arith.constant 0 : i32
    return %c0_i32, %c0_i32_0, %c0_i32_1 : i32, i32, i32
  }
  func.func @transform_3(%arg0: i32) -> (i32, i32, i32) {
    %c0_i32 = arith.constant 0 : i32
    %c0_i32_0 = arith.constant 0 : i32
    %c0_i32_1 = arith.constant 0 : i32
    %c0_i32_2 = arith.constant 0 : i32
    return %c0_i32, %c0_i32_0, %c0_i32_1 : i32, i32, i32
  }
  func.func @transform_4(%arg0: i32) -> (i32, i32, i32) {
    %c0_i32 = arith.constant 0 : i32
    %c0_i32_0 = arith.constant 0 : i32
    %c0_i32_1 = arith.constant 0 : i32
    %c0_i32_2 = arith.constant 0 : i32
    return %c0_i32, %c0_i32_0, %c0_i32_1 : i32, i32, i32
  }
  func.func @transform_5(%arg0: i32) -> (i32, i32, i32) {
    %c0_i32 = arith.constant 0 : i32
    %c0_i32_0 = arith.constant 0 : i32
    %c0_i32_1 = arith.constant 0 : i32
    %c0_i32_2 = arith.constant 0 : i32
    return %c0_i32, %c0_i32_0, %c0_i32_1 : i32, i32, i32
  }
  func.func @transform_6(%arg0: i32) -> (i32, i32, i32) {
    %c0_i32 = arith.constant 0 : i32
    %c0_i32_0 = arith.constant 0 : i32
    %c0_i32_1 = arith.constant 0 : i32
    %c0_i32_2 = arith.constant 0 : i32
    return %c0_i32, %c0_i32_0, %c0_i32_1 : i32, i32, i32
  }
  func.func @transform_7(%arg0: i32) -> (i32, i32) {
    %c0_i32 = arith.constant 0 : i32
    %c0_i32_0 = arith.constant 0 : i32
    return %c0_i32, %arg0 : i32, i32
  }
}

</mosaic_0001>

<llo_original>
// kernel: _pallas_log_prob.1
$region0: #{_pallas_log_prob.1}
  #allocation0 [shape = 'u32[]', space=smem, size = 0x4, offset = 0x4, fixed_abs, tag = 'smem constant byte address 0x4 - core index']
  #allocation1 [shape = 'u32[144,128]{1,0:T(1,128)}', space=vmem, size = 0x12000, scoped, tag = 'internal scratch']
  %s0 = inlined_call_operand.vmem [shape: f32[128,8], index: 0, kind: input, shape index: {}]
  %s1 = inlined_call_operand.vmem [shape: bf16[3,8,64], index: 1, kind: input, shape index: {}]
  %s2 = inlined_call_operand.vmem [shape: f32[3,1,64], index: 2, kind: input, shape index: {}]
  %s3 = inlined_call_operand.vmem [shape: bf16[3,64,64], index: 3, kind: input, shape index: {}]
  %s4 = inlined_call_operand.vmem [shape: f32[3,1,64], index: 4, kind: input, shape index: {}]
  %s5 = inlined_call_operand.vmem [shape: bf16[3,64,16], index: 5, kind: input, shape index: {}]
  %s6 = inlined_call_operand.vmem [shape: f32[3,1,16], index: 6, kind: input, shape index: {}]
  %s7 = inlined_call_operand.hbm [shape: f32[1,128], index: 7, kind: output, shape index: {}]
  %s8 = sld [smem:[#allocation0]]
  $region38: #{_pallas_log_prob.1} parent=0
    _
  %s10 = ssub.s32 1, %s8
  %s11 = scalar_select 0, %s10, %s8
  $region1: #{_pallas_log_prob.1} parent=0
    #allocation2 [shape = 'u8[512]{0}', space=vmem, size = 0x400, scoped, tag = 'output window, operand 0, single buffered']
    #allocation3 [shape = 's32[1]{0}', space=sflag, size = 0x4, scoped, tag = 'scoped memory for _pallas_log_prob.1']
    %12 = vsyncpa [#allocation3], 0
    // Predicated region
    $region2: #{_pallas_log_prob.1} parent=1 // pred_check
      _
    $region3: #{_pallas_log_prob.1} parent=1 // pred_check_branch
      %14 = sbr.rel (0) target = $region5
    $region4: #{_pallas_log_prob.1} parent=1 // pred_region
      _
    $region5: #{_pallas_log_prob.1} parent=1 // pred_fallthru
      _
    // Predicated region
    $region6: #{_pallas_log_prob.1} parent=1 // pred_check
      _
    $region7: #{_pallas_log_prob.1} parent=1 // pred_check_branch
      %16 = sbr.rel (0) target = $region9
    $region8: #{_pallas_log_prob.1} parent=1 // pred_region
      _
    $region9: #{_pallas_log_prob.1} parent=1 // pred_fallthru
      _
    // Predicated region
    $region10: #{_pallas_log_prob.1} parent=1 // pred_check
      _
    $region11: #{_pallas_log_prob.1} parent=1 // pred_check_branch
      %18 = sbr.rel (0) target = $region13
    $region12: #{_pallas_log_prob.1} parent=1 // pred_region
      _
    $region13: #{_pallas_log_prob.1} parent=1 // pred_fallthru
      _
    // Predicated region
    $region14: #{_pallas_log_prob.1} parent=1 // pred_check
      _
    $region15: #{_pallas_log_prob.1} parent=1 // pred_check_branch
      %20 = sbr.rel (0) target = $region17
    $region16: #{_pallas_log_prob.1} parent=1 // pred_region
      _
    $region17: #{_pallas_log_prob.1} parent=1 // pred_fallthru
      _
    // Predicated region
    $region18: #{_pallas_log_prob.1} parent=1 // pred_check
      _
    $region19: #{_pallas_log_prob.1} parent=1 // pred_check_branch
      %22 = sbr.rel (0) target = $region21
    $region20: #{_pallas_log_prob.1} parent=1 // pred_region
      _
    $region21: #{_pallas_log_prob.1} parent=1 // pred_fallthru
      _
    // Predicated region
    $region22: #{_pallas_log_prob.1} parent=1 // pred_check
      _
    $region23: #{_pallas_log_prob.1} parent=1 // pred_check_branch
      %24 = sbr.rel (0) target = $region25
    $region24: #{_pallas_log_prob.1} parent=1 // pred_region
      _
    $region25: #{_pallas_log_prob.1} parent=1 // pred_fallthru
      _
    // Predicated region
    $region26: #{_pallas_log_prob.1} parent=1 // pred_check
      _
    $region27: #{_pallas_log_prob.1} parent=1 // pred_check_branch
      %26 = sbr.rel (0) target = $region29
    $region28: #{_pallas_log_prob.1} parent=1 // pred_region
      _
    $region29: #{_pallas_log_prob.1} parent=1 // pred_fallthru
      _
    %v28 = vld [vmem:[%s0] sm:$0xff]
    %v29 = vld [vmem:[%s0 + $0x8] sm:$0xff]
    %v30 = vld [vmem:[%s0 + $0x10] sm:$0xff]
    %v31 = vld [vmem:[%s0 + $0x18] sm:$0xff]
    %v32 = vld [vmem:[%s0 + $0x20] sm:$0xff]
    %v33 = vld [vmem:[%s0 + $0x28] sm:$0xff]
    %v34 = vld [vmem:[%s0 + $0x30] sm:$0xff]
    %v35 = vld [vmem:[%s0 + $0x38] sm:$0xff]
    %v36 = vld [vmem:[%s0 + $0x40] sm:$0xff]
    %v37 = vld [vmem:[%s0 + $0x48] sm:$0xff]
    %v38 = vld [vmem:[%s0 + $0x50] sm:$0xff]
    %v39 = vld [vmem:[%s0 + $0x58] sm:$0xff]
    %v40 = vld [vmem:[%s0 + $0x60] sm:$0xff]
    %v41 = vld [vmem:[%s0 + $0x68] sm:$0xff]
    %v42 = vld [vmem:[%s0 + $0x70] sm:$0xff]
    %v43 = vld [vmem:[%s0 + $0x78] sm:$0xff]
    %v44 = vpack.c.bf16 %v29, %v28
    %v45 = vpack.c.bf16 %v31, %v30
    %v46 = vpack.c.bf16 %v33, %v32
    %v47 = vpack.c.bf16 %v35, %v34
    %v48 = vpack.c.bf16 %v37, %v36
    %v49 = vpack.c.bf16 %v39, %v38
    %v50 = vpack.c.bf16 %v41, %v40
    %v51 = vpack.c.bf16 %v43, %v42
    %v52 = vld [vmem:[%s1] sm:$0xf]
    %v53 = vld [vmem:[%s2] sm:$0x1]
    %v55 = vlaneseq
    %v56 = vshrl.u32 %v55, 7
    %v57 = vsub.s32 0, %v56
    %v58 = vrot.slane %v53, %v57
    %vm60 = vcmask 64512
    %v62 = vsel %vm60, %v44, 0
    %v65 = vsel %vm60, %v45, 0
    %v68 = vsel %vm60, %v46, 0
    %v71 = vsel %vm60, %v47, 0
    %v74 = vsel %vm60, %v48, 0
    %v77 = vsel %vm60, %v49, 0
    %v80 = vsel %vm60, %v50, 0
    %v83 = vsel %vm60, %v51, 0
    %vm85 = vcmask 1043456
    %v87 = vsel %vm85, %v52, 0
    %89 = vmatprep.subr.bf16.mxu0 0
    %90 = vmatpush1.bf16.msra.mxu0 0
    %91 = vmatprep.subr.bf16.mxu0 0
    %92 = vmatpush1.bf16.msra.mxu0 0
    %93 = vmatprep.subr.bf16.mxu0 0
    %94 = vmatpush1.bf16.msra.mxu0 0
    %95 = vmatprep.subr.bf16.mxu0 0
    %96 = vmatpush1.bf16.msra.mxu0 0
    %97 = vmatprep.subr.bf16.mxu0 0
    %98 = vmatpush1.bf16.msra.mxu0 0
    %99 = vmatprep.subr.bf16.mxu0 0
    %100 = vmatpush1.bf16.msra.mxu0 0
    %101 = vmatprep.subr.bf16.mxu0 0
    %102 = vmatpush1.bf16.msra.mxu0 0
    %103 = vmatprep.subr.bf16.mxu0 0
    %104 = vmatpush1.bf16.msra.mxu0 %v87
    %105 = vmatprep.subr.bf16.mxu0 0
    %106 = vmatpush2.bf16.msra.mxu0 0
    %107 = vmatprep.subr.bf16.mxu0 0
    %108 = vmatpush2.bf16.msra.mxu0 0
    %109 = vmatprep.subr.bf16.mxu0 0
    %110 = vmatpush2.bf16.msra.mxu0 0
    %111 = vmatprep.subr.bf16.mxu0 0
    %112 = vmatpush2.bf16.msra.mxu0 0
    %113 = vmatprep.subr.bf16.mxu0 0
    %114 = vmatpush2.bf16.msra.mxu0 0
    %115 = vmatprep.subr.bf16.mxu0 0
    %116 = vmatpush2.bf16.msra.mxu0 0
    %117 = vmatprep.subr.bf16.mxu0 0
    %118 = vmatpush2.bf16.msra.mxu0 0
    %119 = vmatprep.subr.bf16.mxu0 0
    %120 = vmatpush2.bf16.msra.mxu0 0
    %121 = vmatprep.mubr.bf16.mxu0 0
    %122 = vmatmul.mubr.bf16.gmra.mxu0 %v62
    %v123 = vpop.f32.mrf.mxu0
    %v124 = vadd.f32 %v58, %v123
    %v125 = vpop.f32.mrf.mxu0
    %v126 = vpop.f32.mrf.mxu0
    %v127 = vadd.f32 %v58, %v126
    %v128 = vpop.f32.mrf.mxu0
    %129 = vmatprep.mubr.bf16.mxu0 0
    %130 = vmatmul.mubr.bf16.gmra.mxu0 %v65
    %v131 = vpop.f32.mrf.mxu0
    %v132 = vadd.f32 %v58, %v131
    %v133 = vpop.f32.mrf.mxu0
    %v134 = vpop.f32.mrf.mxu0
    %v135 = vadd.f32 %v58, %v134
    %v136 = vpop.f32.mrf.mxu0
    %137 = vmatprep.mubr.bf16.mxu0 0
    %138 = vmatmul.mubr.bf16.gmra.mxu0 %v68
    %v139 = vpop.f32.mrf.mxu0
    %v140 = vadd.f32 %v58, %v139
    %v141 = vpop.f32.mrf.mxu0
    %v142 = vpop.f32.mrf.mxu0
    %v143 = vadd.f32 %v58, %v142
    %v144 = vpop.f32.mrf.mxu0
    %145 = vmatprep.mubr.bf16.mxu0 0
    %146 = vmatmul.mubr.bf16.gmra.mxu0 %v71
    %v147 = vpop.f32.mrf.mxu0
    %v148 = vadd.f32 %v58, %v147
    %v149 = vpop.f32.mrf.mxu0
    %v150 = vpop.f32.mrf.mxu0
    %v151 = vadd.f32 %v58, %v150
    %v152 = vpop.f32.mrf.mxu0
    %153 = vmatprep.mubr.bf16.mxu0 0
    %154 = vmatmul.mubr.bf16.gmra.mxu0 %v74
    %v155 = vpop.f32.mrf.mxu0
    %v156 = vadd.f32 %v58, %v155
    %v157 = vpop.f32.mrf.mxu0
    %v158 = vpop.f32.mrf.mxu0
    %v159 = vadd.f32 %v58, %v158
    %v160 = vpop.f32.mrf.mxu0
    %161 = vmatprep.mubr.bf16.mxu0 0
    %162 = vmatmul.mubr.bf16.gmra.mxu0 %v77
    %v163 = vpop.f32.mrf.mxu0
    %v164 = vadd.f32 %v58, %v163
    %v165 = vpop.f32.mrf.mxu0
    %v166 = vpop.f32.mrf.mxu0
    %v167 = vadd.f32 %v58, %v166
    %v168 = vpop.f32.mrf.mxu0
    %169 = vmatprep.mubr.bf16.mxu0 0
    %170 = vmatmul.mubr.bf16.gmra.mxu0 %v80
    %v171 = vpop.f32.mrf.mxu0
    %v172 = vadd.f32 %v58, %v171
    %v173 = vpop.f32.mrf.mxu0
    %v174 = vpop.f32.mrf.mxu0
    %v175 = vadd.f32 %v58, %v174
    %v176 = vpop.f32.mrf.mxu0
    %177 = vmatprep.mubr.bf16.mxu0 0
    %178 = vmatmul.mubr.bf16.gmra.mxu0 %v83
    %v179 = vpop.f32.mrf.mxu0
    %v180 = vadd.f32 %v58, %v179
    %v181 = vpop.f32.mrf.mxu0
    %v182 = vpop.f32.mrf.mxu0
    %v183 = vadd.f32 %v58, %v182
    %v184 = vpop.f32.mrf.mxu0
    %185 = vdwg.mxu0
    %v186 = vmax.f32 %v124, 0.0
    %v187 = vmax.f32 %v127, 0.0
    %v188 = vmax.f32 %v132, 0.0
    %v189 = vmax.f32 %v135, 0.0
    %v190 = vmax.f32 %v140, 0.0
    %v191 = vmax.f32 %v143, 0.0
    %v192 = vmax.f32 %v148, 0.0
    %v193 = vmax.f32 %v151, 0.0
    %v194 = vmax.f32 %v156, 0.0
    %v195 = vmax.f32 %v159, 0.0
    %v196 = vmax.f32 %v164, 0.0
    %v197 = vmax.f32 %v167, 0.0
    %v198 = vmax.f32 %v172, 0.0
    %v199 = vmax.f32 %v175, 0.0
    %v200 = vmax.f32 %v180, 0.0
    %v201 = vmax.f32 %v183, 0.0
    %v202 = vpack.c.bf16 %v187, %v186
    %v203 = vpack.c.bf16 %v189, %v188
    %v204 = vpack.c.bf16 %v191, %v190
    %v205 = vpack.c.bf16 %v193, %v192
    %v206 = vpack.c.bf16 %v195, %v194
    %v207 = vpack.c.bf16 %v197, %v196
    %v208 = vpack.c.bf16 %v199, %v198
    %v209 = vpack.c.bf16 %v201, %v200
    %v210 = vld [vmem:[%s3] sm:$0xf]
    %v211 = vld [vmem:[%s3 + $0x4] sm:$0xf]
    %v212 = vld [vmem:[%s3 + $0x8] sm:$0xf]
    %v213 = vld [vmem:[%s3 + $0xc] sm:$0xf]
    %v214 = vld [vmem:[%s3 + $0x10] sm:$0xf]
    %v215 = vld [vmem:[%s3 + $0x14] sm:$0xf]
    %v216 = vld [vmem:[%s3 + $0x18] sm:$0xf]
    %v217 = vld [vmem:[%s3 + $0x1c] sm:$0xf]
    %v218 = vld [vmem:[%s4] sm:$0x1]
    %v220 = vlaneseq
    %v221 = vshrl.u32 %v220, 7
    %v222 = vsub.s32 0, %v221
    %v223 = vrot.slane %v218, %v222
    %v233 = vunpack.c.l.b16 %v210
    %v234 = vunpack.c.l.b16 %v211
    %v235 = vunpack.c.l.b16 %v212
    %v236 = vunpack.c.l.b16 %v213
    %v237 = vunpack.c.l.b16 %v214
    %v238 = vunpack.c.l.b16 %v215
    %v239 = vunpack.c.l.b16 %v216
    %v240 = vunpack.c.l.b16 %v217
    %v241 = vpack.c.b16 %v234, %v233
    %v242 = vpack.c.b16 %v236, %v235
    %v243 = vpack.c.b16 %v238, %v237
    %v244 = vpack.c.b16 %v240, %v239
    %vm249 = vcmask 523264
    %v251 = vsel %vm249, %v202, 0
    %v254 = vsel %vm249, %v203, 0
    %v257 = vsel %vm249, %v204, 0
    %v260 = vsel %vm249, %v205, 0
    %v263 = vsel %vm249, %v206, 0
    %v266 = vsel %vm249, %v207, 0
    %v269 = vsel %vm249, %v208, 0
    %v272 = vsel %vm249, %v209, 0
    %274 = vmatprep.subr.bf16.mxu0 0
    %275 = vmatpush1.bf16.msra.mxu0 0
    %276 = vmatprep.subr.bf16.mxu0 0
    %277 = vmatpush1.bf16.msra.mxu0 0
    %278 = vmatprep.subr.bf16.mxu0 0
    %279 = vmatpush1.bf16.msra.mxu0 0
    %280 = vmatprep.subr.bf16.mxu0 0
    %281 = vmatpush1.bf16.msra.mxu0 0
    %282 = vmatprep.subr.bf16.mxu0 0
    %283 = vmatpush1.bf16.msra.mxu0 %v244
    %284 = vmatprep.subr.bf16.mxu0 0
    %285 = vmatpush1.bf16.msra.mxu0 %v243
    %286 = vmatprep.subr.bf16.mxu0 0
    %287 = vmatpush1.bf16.msra.mxu0 %v242
    %288 = vmatprep.subr.bf16.mxu0 0
    %289 = vmatpush1.bf16.msra.mxu0 %v241
    %290 = vmatprep.subr.bf16.mxu0 0
    %291 = vmatpush2.bf16.msra.mxu0 0
    %292 = vmatprep.subr.bf16.mxu0 0
    %293 = vmatpush2.bf16.msra.mxu0 0
    %294 = vmatprep.subr.bf16.mxu0 0
    %295 = vmatpush2.bf16.msra.mxu0 0
    %296 = vmatprep.subr.bf16.mxu0 0
    %297 = vmatpush2.bf16.msra.mxu0 0
    %298 = vmatprep.subr.bf16.mxu0 0
    %299 = vmatpush2.bf16.msra.mxu0 0
    %300 = vmatprep.subr.bf16.mxu0 0
    %301 = vmatpush2.bf16.msra.mxu0 0
    %302 = vmatprep.subr.bf16.mxu0 0
    %303 = vmatpush2.bf16.msra.mxu0 0
    %304 = vmatprep.subr.bf16.mxu0 0
    %305 = vmatpush2.bf16.msra.mxu0 0
    %306 = vmatprep.mubr.bf16.mxu0 0
    %307 = vmatmul.mubr.bf16.gmra.mxu0 %v251
    %v308 = vpop.f32.mrf.mxu0
    %v309 = vadd.f32 %v223, %v308
    %v310 = vpop.f32.mrf.mxu0
    %v311 = vpop.f32.mrf.mxu0
    %v312 = vadd.f32 %v223, %v311
    %v313 = vpop.f32.mrf.mxu0
    %314 = vmatprep.mubr.bf16.mxu0 0
    %315 = vmatmul.mubr.bf16.gmra.mxu0 %v254
    %v316 = vpop.f32.mrf.mxu0
    %v317 = vadd.f32 %v223, %v316
    %v318 = vpop.f32.mrf.mxu0
    %v319 = vpop.f32.mrf.mxu0
    %v320 = vadd.f32 %v223, %v319
    %v321 = vpop.f32.mrf.mxu0
    %322 = vmatprep.mubr.bf16.mxu0 0
    %323 = vmatmul.mubr.bf16.gmra.mxu0 %v257
    %v324 = vpop.f32.mrf.mxu0
    %v325 = vadd.f32 %v223, %v324
    %v326 = vpop.f32.mrf.mxu0
    %v327 = vpop.f32.mrf.mxu0
    %v328 = vadd.f32 %v223, %v327
    %v329 = vpop.f32.mrf.mxu0
    %330 = vmatprep.mubr.bf16.mxu0 0
    %331 = vmatmul.mubr.bf16.gmra.mxu0 %v260
    %v332 = vpop.f32.mrf.mxu0
    %v333 = vadd.f32 %v223, %v332
    %v334 = vpop.f32.mrf.mxu0
    %v335 = vpop.f32.mrf.mxu0
    %v336 = vadd.f32 %v223, %v335
    %v337 = vpop.f32.mrf.mxu0
    %338 = vmatprep.mubr.bf16.mxu0 0
    %339 = vmatmul.mubr.bf16.gmra.mxu0 %v263
    %v340 = vpop.f32.mrf.mxu0
    %v341 = vadd.f32 %v223, %v340
    %v342 = vpop.f32.mrf.mxu0
    %v343 = vpop.f32.mrf.mxu0
    %v344 = vadd.f32 %v223, %v343
    %v345 = vpop.f32.mrf.mxu0
    %346 = vmatprep.mubr.bf16.mxu0 0
    %347 = vmatmul.mubr.bf16.gmra.mxu0 %v266
    %v348 = vpop.f32.mrf.mxu0
    %v349 = vadd.f32 %v223, %v348
    %v350 = vpop.f32.mrf.mxu0
    %v351 = vpop.f32.mrf.mxu0
    %v352 = vadd.f32 %v223, %v351
    %v353 = vpop.f32.mrf.mxu0
    %354 = vmatprep.mubr.bf16.mxu0 0
    %355 = vmatmul.mubr.bf16.gmra.mxu0 %v269
    %v356 = vpop.f32.mrf.mxu0
    %v357 = vadd.f32 %v223, %v356
    %v358 = vpop.f32.mrf.mxu0
    %v359 = vpop.f32.mrf.mxu0
    %v360 = vadd.f32 %v223, %v359
    %v361 = vpop.f32.mrf.mxu0
    %362 = vmatprep.mubr.bf16.mxu0 0
    %363 = vmatmul.mubr.bf16.gmra.mxu0 %v272
    %v364 = vpop.f32.mrf.mxu0
    %v365 = vadd.f32 %v223, %v364
    %v366 = vpop.f32.mrf.mxu0
    %v367 = vpop.f32.mrf.mxu0
    %v368 = vadd.f32 %v223, %v367
    %v369 = vpop.f32.mrf.mxu0
    %370 = vdwg.mxu0
    %v371 = vmax.f32 %v309, 0.0
    %v372 = vmax.f32 %v312, 0.0
    %v373 = vmax.f32 %v317, 0.0
    %v374 = vmax.f32 %v320, 0.0
    %v375 = vmax.f32 %v325, 0.0
    %v376 = vmax.f32 %v328, 0.0
    %v377 = vmax.f32 %v333, 0.0
    %v378 = vmax.f32 %v336, 0.0
    %v379 = vmax.f32 %v341, 0.0
    %v380 = vmax.f32 %v344, 0.0
    %v381 = vmax.f32 %v349, 0.0
    %v382 = vmax.f32 %v352, 0.0
    %v383 = vmax.f32 %v357, 0.0
    %v384 = vmax.f32 %v360, 0.0
    %v385 = vmax.f32 %v365, 0.0
    %v386 = vmax.f32 %v368, 0.0
    %v387 = vpack.c.bf16 %v372, %v371
    %v388 = vpack.c.bf16 %v374, %v373
    %v389 = vpack.c.bf16 %v376, %v375
    %v390 = vpack.c.bf16 %v378, %v377
    %v391 = vpack.c.bf16 %v380, %v379
    %v392 = vpack.c.bf16 %v382, %v381
    %v393 = vpack.c.bf16 %v384, %v383
    %v394 = vpack.c.bf16 %v386, %v385
    %v395 = vld [vmem:[%s5] sm:$0xf]
    %v396 = vld [vmem:[%s5 + $0x4] sm:$0xf]
    %v397 = vld [vmem:[%s5 + $0x8] sm:$0xf]
    %v398 = vld [vmem:[%s5 + $0xc] sm:$0xf]
    %v399 = vld [vmem:[%s5 + $0x10] sm:$0xf]
    %v400 = vld [vmem:[%s5 + $0x14] sm:$0xf]
    %v401 = vld [vmem:[%s5 + $0x18] sm:$0xf]
    %v402 = vld [vmem:[%s5 + $0x1c] sm:$0xf]
    %v403 = vld [vmem:[%s6] sm:$0x1]
    %v405 = vlaneseq
    %v406 = vshrl.u32 %v405, 7
    %v407 = vsub.s32 0, %v406
    %v408 = vrot.slane %v403, %v407
    %v418 = vunpack.c.l.b16 %v395
    %v419 = vunpack.c.l.b16 %v396
    %v420 = vunpack.c.l.b16 %v397
    %v421 = vunpack.c.l.b16 %v398
    %v422 = vunpack.c.l.b16 %v399
    %v423 = vunpack.c.l.b16 %v400
    %v424 = vunpack.c.l.b16 %v401
    %v425 = vunpack.c.l.b16 %v402
    %v426 = vpack.c.b16 %v419, %v418
    %v427 = vpack.c.b16 %v421, %v420
    %v428 = vpack.c.b16 %v423, %v422
    %v429 = vpack.c.b16 %v425, %v424
    %v435 = vsel %vm249, %v387, 0
    %v438 = vsel %vm249, %v388, 0
    %v441 = vsel %vm249, %v389, 0
    %v444 = vsel %vm249, %v390, 0
    %v447 = vsel %vm249, %v391, 0
    %v450 = vsel %vm249, %v392, 0
    %v453 = vsel %vm249, %v393, 0
    %v456 = vsel %vm249, %v394, 0
    %458 = vmatprep.subr.bf16.mxu0 0
    %459 = vmatpush1.bf16.msra.mxu0 0
    %460 = vmatprep.subr.bf16.mxu0 0
    %461 = vmatpush1.bf16.msra.mxu0 0
    %462 = vmatprep.subr.bf16.mxu0 0
    %463 = vmatpush1.bf16.msra.mxu0 0
    %464 = vmatprep.subr.bf16.mxu0 0
    %465 = vmatpush1.bf16.msra.mxu0 0
    %466 = vmatprep.subr.bf16.mxu0 0
    %467 = vmatpush1.bf16.msra.mxu0 %v429
    %468 = vmatprep.subr.bf16.mxu0 0
    %469 = vmatpush1.bf16.msra.mxu0 %v428
    %470 = vmatprep.subr.bf16.mxu0 0
    %471 = vmatpush1.bf16.msra.mxu0 %v427
    %472 = vmatprep.subr.bf16.mxu0 0
    %473 = vmatpush1.bf16.msra.mxu0 %v426
    %474 = vmatprep.subr.bf16.mxu0 0
    %475 = vmatpush2.bf16.msra.mxu0 0
    %476 = vmatprep.subr.bf16.mxu0 0
    %477 = vmatpush2.bf16.msra.mxu0 0
    %478 = vmatprep.subr.bf16.mxu0 0
    %479 = vmatpush2.bf16.msra.mxu0 0
    %480 = vmatprep.subr.bf16.mxu0 0
    %481 = vmatpush2.bf16.msra.mxu0 0
    %482 = vmatprep.subr.bf16.mxu0 0
    %483 = vmatpush2.bf16.msra.mxu0 0
    %484 = vmatprep.subr.bf16.mxu0 0
    %485 = vmatpush2.bf16.msra.mxu0 0
    %486 = vmatprep.subr.bf16.mxu0 0
    %487 = vmatpush2.bf16.msra.mxu0 0
    %488 = vmatprep.subr.bf16.mxu0 0
    %489 = vmatpush2.bf16.msra.mxu0 0
    %490 = vmatprep.mubr.bf16.mxu0 0
    %491 = vmatmul.mubr.bf16.gmra.mxu0 %v435
    %v492 = vpop.f32.mrf.mxu0
    %v493 = vadd.f32 %v408, %v492
    %v494 = vpop.f32.mrf.mxu0
    %v495 = vpop.f32.mrf.mxu0
    %v496 = vadd.f32 %v408, %v495
    %v497 = vpop.f32.mrf.mxu0
    %498 = vmatprep.mubr.bf16.mxu0 0
    %499 = vmatmul.mubr.bf16.gmra.mxu0 %v438
    %v500 = vpop.f32.mrf.mxu0
    %v501 = vadd.f32 %v408, %v500
    %v502 = vpop.f32.mrf.mxu0
    %v503 = vpop.f32.mrf.mxu0
    %v504 = vadd.f32 %v408, %v503
    %v505 = vpop.f32.mrf.mxu0
    %506 = vmatprep.mubr.bf16.mxu0 0
    %507 = vmatmul.mubr.bf16.gmra.mxu0 %v441
    %v508 = vpop.f32.mrf.mxu0
    %v509 = vadd.f32 %v408, %v508
    %v510 = vpop.f32.mrf.mxu0
    %v511 = vpop.f32.mrf.mxu0
    %v512 = vadd.f32 %v408, %v511
    %v513 = vpop.f32.mrf.mxu0
    %514 = vmatprep.mubr.bf16.mxu0 0
    %515 = vmatmul.mubr.bf16.gmra.mxu0 %v444
    %v516 = vpop.f32.mrf.mxu0
    %v517 = vadd.f32 %v408, %v516
    %v518 = vpop.f32.mrf.mxu0
    %v519 = vpop.f32.mrf.mxu0
    %v520 = vadd.f32 %v408, %v519
    %v521 = vpop.f32.mrf.mxu0
    %522 = vmatprep.mubr.bf16.mxu0 0
    %523 = vmatmul.mubr.bf16.gmra.mxu0 %v447
    %v524 = vpop.f32.mrf.mxu0
    %v525 = vadd.f32 %v408, %v524
    %v526 = vpop.f32.mrf.mxu0
    %v527 = vpop.f32.mrf.mxu0
    %v528 = vadd.f32 %v408, %v527
    %v529 = vpop.f32.mrf.mxu0
    %530 = vmatprep.mubr.bf16.mxu0 0
    %531 = vmatmul.mubr.bf16.gmra.mxu0 %v450
    %v532 = vpop.f32.mrf.mxu0
    %v533 = vadd.f32 %v408, %v532
    %v534 = vpop.f32.mrf.mxu0
    %v535 = vpop.f32.mrf.mxu0
    %v536 = vadd.f32 %v408, %v535
    %v537 = vpop.f32.mrf.mxu0
    %538 = vmatprep.mubr.bf16.mxu0 0
    %539 = vmatmul.mubr.bf16.gmra.mxu0 %v453
    %v540 = vpop.f32.mrf.mxu0
    %v541 = vadd.f32 %v408, %v540
    %v542 = vpop.f32.mrf.mxu0
    %v543 = vpop.f32.mrf.mxu0
    %v544 = vadd.f32 %v408, %v543
    %v545 = vpop.f32.mrf.mxu0
    %546 = vmatprep.mubr.bf16.mxu0 0
    %547 = vmatmul.mubr.bf16.gmra.mxu0 %v456
    %v548 = vpop.f32.mrf.mxu0
    %v549 = vadd.f32 %v408, %v548
    %v550 = vpop.f32.mrf.mxu0
    %v551 = vpop.f32.mrf.mxu0
    %v552 = vadd.f32 %v408, %v551
    %v553 = vpop.f32.mrf.mxu0
    %554 = vdwg.mxu0
    %v555 = vand.u32 2147483647, %v493
    %v556 = vand.u32 2147483647, %v496
    %v557 = vand.u32 2147483647, %v501
    %v558 = vand.u32 2147483647, %v504
    %v559 = vand.u32 2147483647, %v509
    %v560 = vand.u32 2147483647, %v512
    %v561 = vand.u32 2147483647, %v517
    %v562 = vand.u32 2147483647, %v520
    %v563 = vand.u32 2147483647, %v525
    %v564 = vand.u32 2147483647, %v528
    %v565 = vand.u32 2147483647, %v533
    %v566 = vand.u32 2147483647, %v536
    %v567 = vand.u32 2147483647, %v541
    %v568 = vand.u32 2147483647, %v544
    %v569 = vand.u32 2147483647, %v549
    %v570 = vand.u32 2147483647, %v552
    %v571 = vmul.f32 %v555, 0.14476483
    %v572 = vmul.f32 %v556, 0.14476483
    %v573 = vmul.f32 %v557, 0.14476483
    %v574 = vmul.f32 %v558, 0.14476483
    %v575 = vmul.f32 %v559, 0.14476483
    %v576 = vmul.f32 %v560, 0.14476483
    %v577 = vmul.f32 %v561, 0.14476483
    %v578 = vmul.f32 %v562, 0.14476483
    %v579 = vmul.f32 %v563, 0.14476483
    %v580 = vmul.f32 %v564, 0.14476483
    %v581 = vmul.f32 %v565, 0.14476483
    %v582 = vmul.f32 %v566, 0.14476483
    %v583 = vmul.f32 %v567, 0.14476483
    %v584 = vmul.f32 %v568, 0.14476483
    %v585 = vmul.f32 %v569, 0.14476483
    %v586 = vmul.f32 %v570, 0.14476483
    %v587 = vadd.f32 %v571, 1.0
    %v588 = vadd.f32 %v572, 1.0
    %v589 = vadd.f32 %v573, 1.0
    %v590 = vadd.f32 %v574, 1.0
    %v591 = vadd.f32 %v575, 1.0
    %v592 = vadd.f32 %v576, 1.0
    %v593 = vadd.f32 %v577, 1.0
    %v594 = vadd.f32 %v578, 1.0
    %v595 = vadd.f32 %v579, 1.0
    %v596 = vadd.f32 %v580, 1.0
    %v597 = vadd.f32 %v581, 1.0
    %v598 = vadd.f32 %v582, 1.0
    %v599 = vadd.f32 %v583, 1.0
    %v600 = vadd.f32 %v584, 1.0
    %v601 = vadd.f32 %v585, 1.0
    %v602 = vadd.f32 %v586, 1.0
    %v603 = vrcp.pop %v587
    %v604 = vmul.f32 %v493, %v603
    %v605 = vrcp.pop %v588
    %v606 = vmul.f32 %v496, %v605
    %v607 = vrcp.pop %v589
    %v608 = vmul.f32 %v501, %v607
    %v609 = vrcp.pop %v590
    %v610 = vmul.f32 %v504, %v609
    %v611 = vrcp.pop %v591
    %v612 = vmul.f32 %v509, %v611
    %v613 = vrcp.pop %v592
    %v614 = vmul.f32 %v512, %v613
    %v615 = vrcp.pop %v593
    %v616 = vmul.f32 %v517, %v615
    %v617 = vrcp.pop %v594
    %v618 = vmul.f32 %v520, %v617
    %v619 = vrcp.pop %v595
    %v620 = vmul.f32 %v525, %v619
    %v621 = vrcp.pop %v596
    %v622 = vmul.f32 %v528, %v621
    %v623 = vrcp.pop %v597
    %v624 = vmul.f32 %v533, %v623
    %v625 = vrcp.pop %v598
    %v626 = vmul.f32 %v536, %v625
    %v627 = vrcp.pop %v599
    %v628 = vmul.f32 %v541, %v627
    %v629 = vrcp.pop %v600
    %v630 = vmul.f32 %v544, %v629
    %v631 = vrcp.pop %v601
    %v632 = vmul.f32 %v549, %v631
    %v633 = vrcp.pop %v602
    %v634 = vmul.f32 %v552, %v633
    %v635 = vadd.f32 %v604, 0.0
    %v636 = vadd.f32 %v606, 0.0
    %v637 = vadd.f32 %v608, 0.0
    %v638 = vadd.f32 %v610, 0.0
    %v639 = vadd.f32 %v612, 0.0
    %v640 = vadd.f32 %v614, 0.0
    %v641 = vadd.f32 %v616, 0.0
    %v642 = vadd.f32 %v618, 0.0
    %v643 = vadd.f32 %v620, 0.0
    %v644 = vadd.f32 %v622, 0.0
    %v645 = vadd.f32 %v624, 0.0
    %v646 = vadd.f32 %v626, 0.0
    %v647 = vadd.f32 %v628, 0.0
    %v648 = vadd.f32 %v630, 0.0
    %v649 = vadd.f32 %v632, 0.0
    %v650 = vadd.f32 %v634, 0.0
    %v651 = vmul.f32 %v604, 1.442695
    %v652 = vpow.pop %v651
    %v653 = vmul.f32 %v606, 1.442695
    %v654 = vpow.pop %v653
    %v655 = vmul.f32 %v608, 1.442695
    %v656 = vpow.pop %v655
    %v657 = vmul.f32 %v610, 1.442695
    %v658 = vpow.pop %v657
    %v659 = vmul.f32 %v612, 1.442695
    %v660 = vpow.pop %v659
    %v661 = vmul.f32 %v614, 1.442695
    %v662 = vpow.pop %v661
    %v663 = vmul.f32 %v616, 1.442695
    %v664 = vpow.pop %v663
    %v665 = vmul.f32 %v618, 1.442695
    %v666 = vpow.pop %v665
    %v667 = vmul.f32 %v620, 1.442695
    %v668 = vpow.pop %v667
    %v669 = vmul.f32 %v622, 1.442695
    %v670 = vpow.pop %v669
    %v671 = vmul.f32 %v624, 1.442695
    %v672 = vpow.pop %v671
    %v673 = vmul.f32 %v626, 1.442695
    %v674 = vpow.pop %v673
    %v675 = vmul.f32 %v628, 1.442695
    %v676 = vpow.pop %v675
    %v677 = vmul.f32 %v630, 1.442695
    %v678 = vpow.pop %v677
    %v679 = vmul.f32 %v632, 1.442695
    %v680 = vpow.pop %v679
    %v681 = vmul.f32 %v634, 1.442695
    %v682 = vpow.pop %v681
    %699 = vrot.lane.b32.xlu0 %v652, 120
    %v700 = vpop.permute.xlu0 %699
    %701 = vrot.lane.b32.xlu0 %v654, 120
    %v702 = vpop.permute.xlu0 %701
    %703 = vrot.lane.b32.xlu0 %v656, 120
    %v704 = vpop.permute.xlu0 %703
    %705 = vrot.lane.b32.xlu0 %v658, 120
    %v706 = vpop.permute.xlu0 %705
    %707 = vrot.lane.b32.xlu0 %v660, 120
    %v708 = vpop.permute.xlu0 %707
    %709 = vrot.lane.b32.xlu0 %v662, 120
    %v710 = vpop.permute.xlu0 %709
    %711 = vrot.lane.b32.xlu0 %v664, 120
    %v712 = vpop.permute.xlu0 %711
    %713 = vrot.lane.b32.xlu0 %v666, 120
    %v714 = vpop.permute.xlu0 %713
    %715 = vrot.lane.b32.xlu0 %v668, 120
    %v716 = vpop.permute.xlu0 %715
    %717 = vrot.lane.b32.xlu0 %v670, 120
    %v718 = vpop.permute.xlu0 %717
    %719 = vrot.lane.b32.xlu0 %v672, 120
    %v720 = vpop.permute.xlu0 %719
    %721 = vrot.lane.b32.xlu0 %v674, 120
    %v722 = vpop.permute.xlu0 %721
    %723 = vrot.lane.b32.xlu0 %v676, 120
    %v724 = vpop.permute.xlu0 %723
    %725 = vrot.lane.b32.xlu0 %v678, 120
    %v726 = vpop.permute.xlu0 %725
    %727 = vrot.lane.b32.xlu0 %v680, 120
    %v728 = vpop.permute.xlu0 %727
    %729 = vrot.lane.b32.xlu0 %v682, 120
    %v730 = vpop.permute.xlu0 %729
    %v747 = vmul.f32 %v28, %v700
    %v748 = vmul.f32 %v29, %v702
    %v749 = vmul.f32 %v30, %v704
    %v750 = vmul.f32 %v31, %v706
    %v751 = vmul.f32 %v32, %v708
    %v752 = vmul.f32 %v33, %v710
    %v753 = vmul.f32 %v34, %v712
    %v754 = vmul.f32 %v35, %v714
    %v755 = vmul.f32 %v36, %v716
    %v756 = vmul.f32 %v37, %v718
    %v757 = vmul.f32 %v38, %v720
    %v758 = vmul.f32 %v39, %v722
    %v759 = vmul.f32 %v40, %v724
    %v760 = vmul.f32 %v41, %v726
    %v761 = vmul.f32 %v42, %v728
    %v762 = vmul.f32 %v43, %v730
    %v763 = vadd.f32 %v747, %v493
    %v764 = vadd.f32 %v748, %v496
    %v765 = vadd.f32 %v749, %v501
    %v766 = vadd.f32 %v750, %v504
    %v767 = vadd.f32 %v751, %v509
    %v768 = vadd.f32 %v752, %v512
    %v769 = vadd.f32 %v753, %v517
    %v770 = vadd.f32 %v754, %v520
    %v771 = vadd.f32 %v755, %v525
    %v772 = vadd.f32 %v756, %v528
    %v773 = vadd.f32 %v757, %v533
    %v774 = vadd.f32 %v758, %v536
    %v775 = vadd.f32 %v759, %v541
    %v776 = vadd.f32 %v760, %v544
    %v777 = vadd.f32 %v761, %v549
    %v778 = vadd.f32 %v762, %v552
    %v779 = vpack.c.bf16 %v764, %v763
    %v780 = vpack.c.bf16 %v766, %v765
    %v781 = vpack.c.bf16 %v768, %v767
    %v782 = vpack.c.bf16 %v770, %v769
    %v783 = vpack.c.bf16 %v772, %v771
    %v784 = vpack.c.bf16 %v774, %v773
    %v785 = vpack.c.bf16 %v776, %v775
    %v786 = vpack.c.bf16 %v778, %v777
    %s787 = scalar_lea.vmem %s1, 4
    %v788 = vld [vmem:[%s787] sm:$0xf]
    %s789 = scalar_lea.vmem %s2, 1
    %v790 = vld [vmem:[%s789] sm:$0x1]
    %v792 = vlaneseq
    %v793 = vshrl.u32 %v792, 7
    %v794 = vsub.s32 0, %v793
    %v795 = vrot.slane %v790, %v794
    %v798 = vsel %vm60, %v779, 0
    %v801 = vsel %vm60, %v780, 0
    %v804 = vsel %vm60, %v781, 0
    %v807 = vsel %vm60, %v782, 0
    %v810 = vsel %vm60, %v783, 0
    %v813 = vsel %vm60, %v784, 0
    %v816 = vsel %vm60, %v785, 0
    %v819 = vsel %vm60, %v786, 0
    %v822 = vsel %vm85, %v788, 0
    %824 = vmatprep.subr.bf16.mxu0 0
    %825 = vmatpush1.bf16.msra.mxu0 0
    %826 = vmatprep.subr.bf16.mxu0 0
    %827 = vmatpush1.bf16.msra.mxu0 0
    %828 = vmatprep.subr.bf16.mxu0 0
    %829 = vmatpush1.bf16.msra.mxu0 0
    %830 = vmatprep.subr.bf16.mxu0 0
    %831 = vmatpush1.bf16.msra.mxu0 0
    %832 = vmatprep.subr.bf16.mxu0 0
    %833 = vmatpush1.bf16.msra.mxu0 0
    %834 = vmatprep.subr.bf16.mxu0 0
    %835 = vmatpush1.bf16.msra.mxu0 0
    %836 = vmatprep.subr.bf16.mxu0 0
    %837 = vmatpush1.bf16.msra.mxu0 0
    %838 = vmatprep.subr.bf16.mxu0 0
    %839 = vmatpush1.bf16.msra.mxu0 %v822
    %840 = vmatprep.subr.bf16.mxu0 0
    %841 = vmatpush2.bf16.msra.mxu0 0
    %842 = vmatprep.subr.bf16.mxu0 0
    %843 = vmatpush2.bf16.msra.mxu0 0
    %844 = vmatprep.subr.bf16.mxu0 0
    %845 = vmatpush2.bf16.msra.mxu0 0
    %846 = vmatprep.subr.bf16.mxu0 0
    %847 = vmatpush2.bf16.msra.mxu0 0
    %848 = vmatprep.subr.bf16.mxu0 0
    %849 = vmatpush2.bf16.msra.mxu0 0
    %850 = vmatprep.subr.bf16.mxu0 0
    %851 = vmatpush2.bf16.msra.mxu0 0
    %852 = vmatprep.subr.bf16.mxu0 0
    %853 = vmatpush2.bf16.msra.mxu0 0
    %854 = vmatprep.subr.bf16.mxu0 0
    %855 = vmatpush2.bf16.msra.mxu0 0
    %856 = vmatprep.mubr.bf16.mxu0 0
    %857 = vmatmul.mubr.bf16.gmra.mxu0 %v798
    %v858 = vpop.f32.mrf.mxu0
    %v859 = vadd.f32 %v795, %v858
    %v860 = vpop.f32.mrf.mxu0
    %v861 = vpop.f32.mrf.mxu0
    %v862 = vadd.f32 %v795, %v861
    %v863 = vpop.f32.mrf.mxu0
    %864 = vmatprep.mubr.bf16.mxu0 0
    %865 = vmatmul.mubr.bf16.gmra.mxu0 %v801
    %v866 = vpop.f32.mrf.mxu0
    %v867 = vadd.f32 %v795, %v866
    %v868 = vpop.f32.mrf.mxu0
    %v869 = vpop.f32.mrf.mxu0
    %v870 = vadd.f32 %v795, %v869
    %v871 = vpop.f32.mrf.mxu0
    %872 = vmatprep.mubr.bf16.mxu0 0
    %873 = vmatmul.mubr.bf16.gmra.mxu0 %v804
    %v874 = vpop.f32.mrf.mxu0
    %v875 = vadd.f32 %v795, %v874
    %v876 = vpop.f32.mrf.mxu0
    %v877 = vpop.f32.mrf.mxu0
    %v878 = vadd.f32 %v795, %v877
    %v879 = vpop.f32.mrf.mxu0
    %880 = vmatprep.mubr.bf16.mxu0 0
    %881 = vmatmul.mubr.bf16.gmra.mxu0 %v807
    %v882 = vpop.f32.mrf.mxu0
    %v883 = vadd.f32 %v795, %v882
    %v884 = vpop.f32.mrf.mxu0
    %v885 = vpop.f32.mrf.mxu0
    %v886 = vadd.f32 %v795, %v885
    %v887 = vpop.f32.mrf.mxu0
    %888 = vmatprep.mubr.bf16.mxu0 0
    %889 = vmatmul.mubr.bf16.gmra.mxu0 %v810
    %v890 = vpop.f32.mrf.mxu0
    %v891 = vadd.f32 %v795, %v890
    %v892 = vpop.f32.mrf.mxu0
    %v893 = vpop.f32.mrf.mxu0
    %v894 = vadd.f32 %v795, %v893
    %v895 = vpop.f32.mrf.mxu0
    %896 = vmatprep.mubr.bf16.mxu0 0
    %897 = vmatmul.mubr.bf16.gmra.mxu0 %v813
    %v898 = vpop.f32.mrf.mxu0
    %v899 = vadd.f32 %v795, %v898
    %v900 = vpop.f32.mrf.mxu0
    %v901 = vpop.f32.mrf.mxu0
    %v902 = vadd.f32 %v795, %v901
    %v903 = vpop.f32.mrf.mxu0
    %904 = vmatprep.mubr.bf16.mxu0 0
    %905 = vmatmul.mubr.bf16.gmra.mxu0 %v816
    %v906 = vpop.f32.mrf.mxu0
    %v907 = vadd.f32 %v795, %v906
    %v908 = vpop.f32.mrf.mxu0
    %v909 = vpop.f32.mrf.mxu0
    %v910 = vadd.f32 %v795, %v909
    %v911 = vpop.f32.mrf.mxu0
    %912 = vmatprep.mubr.bf16.mxu0 0
    %913 = vmatmul.mubr.bf16.gmra.mxu0 %v819
    %v914 = vpop.f32.mrf.mxu0
    %v915 = vadd.f32 %v795, %v914
    %v916 = vpop.f32.mrf.mxu0
    %v917 = vpop.f32.mrf.mxu0
    %v918 = vadd.f32 %v795, %v917
    %v919 = vpop.f32.mrf.mxu0
    %920 = vdwg.mxu0
    %v921 = vmax.f32 %v859, 0.0
    %v922 = vmax.f32 %v862, 0.0
    %v923 = vmax.f32 %v867, 0.0
    %v924 = vmax.f32 %v870, 0.0
    %v925 = vmax.f32 %v875, 0.0
    %v926 = vmax.f32 %v878, 0.0
    %v927 = vmax.f32 %v883, 0.0
    %v928 = vmax.f32 %v886, 0.0
    %v929 = vmax.f32 %v891, 0.0
    %v930 = vmax.f32 %v894, 0.0
    %v931 = vmax.f32 %v899, 0.0
    %v932 = vmax.f32 %v902, 0.0
    %v933 = vmax.f32 %v907, 0.0
    %v934 = vmax.f32 %v910, 0.0
    %v935 = vmax.f32 %v915, 0.0
    %v936 = vmax.f32 %v918, 0.0
    %v937 = vpack.c.bf16 %v922, %v921
    %v938 = vpack.c.bf16 %v924, %v923
    %v939 = vpack.c.bf16 %v926, %v925
    %v940 = vpack.c.bf16 %v928, %v927
    %v941 = vpack.c.bf16 %v930, %v929
    %v942 = vpack.c.bf16 %v932, %v931
    %v943 = vpack.c.bf16 %v934, %v933
    %v944 = vpack.c.bf16 %v936, %v935
    %s945 = scalar_lea.vmem %s3, 32
    %v946 = vld [vmem:[%s945] sm:$0xf]
    %v947 = vld [vmem:[%s945 + $0x4] sm:$0xf]
    %v948 = vld [vmem:[%s945 + $0x8] sm:$0xf]
    %v949 = vld [vmem:[%s945 + $0xc] sm:$0xf]
    %v950 = vld [vmem:[%s945 + $0x10] sm:$0xf]
    %v951 = vld [vmem:[%s945 + $0x14] sm:$0xf]
    %v952 = vld [vmem:[%s945 + $0x18] sm:$0xf]
    %v953 = vld [vmem:[%s945 + $0x1c] sm:$0xf]
    %s954 = scalar_lea.vmem %s4, 1
    %v955 = vld [vmem:[%s954] sm:$0x1]
    %v957 = vlaneseq
    %v958 = vshrl.u32 %v957, 7
    %v959 = vsub.s32 0, %v958
    %v960 = vrot.slane %v955, %v959
    %v970 = vunpack.c.l.b16 %v946
    %v971 = vunpack.c.l.b16 %v947
    %v972 = vunpack.c.l.b16 %v948
    %v973 = vunpack.c.l.b16 %v949
    %v974 = vunpack.c.l.b16 %v950
    %v975 = vunpack.c.l.b16 %v951
    %v976 = vunpack.c.l.b16 %v952
    %v977 = vunpack.c.l.b16 %v953
    %v978 = vpack.c.b16 %v971, %v970
    %v979 = vpack.c.b16 %v973, %v972
    %v980 = vpack.c.b16 %v975, %v974
    %v981 = vpack.c.b16 %v977, %v976
    %v987 = vsel %vm249, %v937, 0
    %v990 = vsel %vm249, %v938, 0
    %v993 = vsel %vm249, %v939, 0
    %v996 = vsel %vm249, %v940, 0
    %v999 = vsel %vm249, %v941, 0
    %v1002 = vsel %vm249, %v942, 0
    %v1005 = vsel %vm249, %v943, 0
    %v1008 = vsel %vm249, %v944, 0
    %1010 = vmatprep.subr.bf16.mxu0 0
    %1011 = vmatpush1.bf16.msra.mxu0 0
    %1012 = vmatprep.subr.bf16.mxu0 0
    %1013 = vmatpush1.bf16.msra.mxu0 0
    %1014 = vmatprep.subr.bf16.mxu0 0
    %1015 = vmatpush1.bf16.msra.mxu0 0
    %1016 = vmatprep.subr.bf16.mxu0 0
    %1017 = vmatpush1.bf16.msra.mxu0 0
    %1018 = vmatprep.subr.bf16.mxu0 0
    %1019 = vmatpush1.bf16.msra.mxu0 %v981
    %1020 = vmatprep.subr.bf16.mxu0 0
    %1021 = vmatpush1.bf16.msra.mxu0 %v980
    %1022 = vmatprep.subr.bf16.mxu0 0
    %1023 = vmatpush1.bf16.msra.mxu0 %v979
    %1024 = vmatprep.subr.bf16.mxu0 0
    %1025 = vmatpush1.bf16.msra.mxu0 %v978
    %1026 = vmatprep.subr.bf16.mxu0 0
    %1027 = vmatpush2.bf16.msra.mxu0 0
    %1028 = vmatprep.subr.bf16.mxu0 0
    %1029 = vmatpush2.bf16.msra.mxu0 0
    %1030 = vmatprep.subr.bf16.mxu0 0
    %1031 = vmatpush2.bf16.msra.mxu0 0
    %1032 = vmatprep.subr.bf16.mxu0 0
    %1033 = vmatpush2.bf16.msra.mxu0 0
    %1034 = vmatprep.subr.bf16.mxu0 0
    %1035 = vmatpush2.bf16.msra.mxu0 0
    %1036 = vmatprep.subr.bf16.mxu0 0
    %1037 = vmatpush2.bf16.msra.mxu0 0
    %1038 = vmatprep.subr.bf16.mxu0 0
    %1039 = vmatpush2.bf16.msra.mxu0 0
    %1040 = vmatprep.subr.bf16.mxu0 0
    %1041 = vmatpush2.bf16.msra.mxu0 0
    %1042 = vmatprep.mubr.bf16.mxu0 0
    %1043 = vmatmul.mubr.bf16.gmra.mxu0 %v987
    %v1044 = vpop.f32.mrf.mxu0
    %v1045 = vadd.f32 %v960, %v1044
    %v1046 = vpop.f32.mrf.mxu0
    %v1047 = vpop.f32.mrf.mxu0
    %v1048 = vadd.f32 %v960, %v1047
    %v1049 = vpop.f32.mrf.mxu0
    %1050 = vmatprep.mubr.bf16.mxu0 0
    %1051 = vmatmul.mubr.bf16.gmra.mxu0 %v990
    %v1052 = vpop.f32.mrf.mxu0
    %v1053 = vadd.f32 %v960, %v1052
    %v1054 = vpop.f32.mrf.mxu0
    %v1055 = vpop.f32.mrf.mxu0
    %v1056 = vadd.f32 %v960, %v1055
    %v1057 = vpop.f32.mrf.mxu0
    %1058 = vmatprep.mubr.bf16.mxu0 0
    %1059 = vmatmul.mubr.bf16.gmra.mxu0 %v993
    %v1060 = vpop.f32.mrf.mxu0
    %v1061 = vadd.f32 %v960, %v1060
    %v1062 = vpop.f32.mrf.mxu0
    %v1063 = vpop.f32.mrf.mxu0
    %v1064 = vadd.f32 %v960, %v1063
    %v1065 = vpop.f32.mrf.mxu0
    %1066 = vmatprep.mubr.bf16.mxu0 0
    %1067 = vmatmul.mubr.bf16.gmra.mxu0 %v996
    %v1068 = vpop.f32.mrf.mxu0
    %v1069 = vadd.f32 %v960, %v1068
    %v1070 = vpop.f32.mrf.mxu0
    %v1071 = vpop.f32.mrf.mxu0
    %v1072 = vadd.f32 %v960, %v1071
    %v1073 = vpop.f32.mrf.mxu0
    %1074 = vmatprep.mubr.bf16.mxu0 0
    %1075 = vmatmul.mubr.bf16.gmra.mxu0 %v999
    %v1076 = vpop.f32.mrf.mxu0
    %v1077 = vadd.f32 %v960, %v1076
    %v1078 = vpop.f32.mrf.mxu0
    %v1079 = vpop.f32.mrf.mxu0
    %v1080 = vadd.f32 %v960, %v1079
    %v1081 = vpop.f32.mrf.mxu0
    %1082 = vmatprep.mubr.bf16.mxu0 0
    %1083 = vmatmul.mubr.bf16.gmra.mxu0 %v1002
    %v1084 = vpop.f32.mrf.mxu0
    %v1085 = vadd.f32 %v960, %v1084
    %v1086 = vpop.f32.mrf.mxu0
    %v1087 = vpop.f32.mrf.mxu0
    %v1088 = vadd.f32 %v960, %v1087
    %v1089 = vpop.f32.mrf.mxu0
    %1090 = vmatprep.mubr.bf16.mxu0 0
    %1091 = vmatmul.mubr.bf16.gmra.mxu0 %v1005
    %v1092 = vpop.f32.mrf.mxu0
    %v1093 = vadd.f32 %v960, %v1092
    %v1094 = vpop.f32.mrf.mxu0
    %v1095 = vpop.f32.mrf.mxu0
    %v1096 = vadd.f32 %v960, %v1095
    %v1097 = vpop.f32.mrf.mxu0
    %1098 = vmatprep.mubr.bf16.mxu0 0
    %1099 = vmatmul.mubr.bf16.gmra.mxu0 %v1008
    %v1100 = vpop.f32.mrf.mxu0
    %v1101 = vadd.f32 %v960, %v1100
    %v1102 = vpop.f32.mrf.mxu0
    %v1103 = vpop.f32.mrf.mxu0
    %v1104 = vadd.f32 %v960, %v1103
    %v1105 = vpop.f32.mrf.mxu0
    %1106 = vdwg.mxu0
    %v1107 = vmax.f32 %v1045, 0.0
    %v1108 = vmax.f32 %v1048, 0.0
    %v1109 = vmax.f32 %v1053, 0.0
    %v1110 = vmax.f32 %v1056, 0.0
    %v1111 = vmax.f32 %v1061, 0.0
    %v1112 = vmax.f32 %v1064, 0.0
    %v1113 = vmax.f32 %v1069, 0.0
    %v1114 = vmax.f32 %v1072, 0.0
    %v1115 = vmax.f32 %v1077, 0.0
    %v1116 = vmax.f32 %v1080, 0.0
    %v1117 = vmax.f32 %v1085, 0.0
    %v1118 = vmax.f32 %v1088, 0.0
    %v1119 = vmax.f32 %v1093, 0.0
    %v1120 = vmax.f32 %v1096, 0.0
    %v1121 = vmax.f32 %v1101, 0.0
    %v1122 = vmax.f32 %v1104, 0.0
    %v1123 = vpack.c.bf16 %v1108, %v1107
    %v1124 = vpack.c.bf16 %v1110, %v1109
    %v1125 = vpack.c.bf16 %v1112, %v1111
    %v1126 = vpack.c.bf16 %v1114, %v1113
    %v1127 = vpack.c.bf16 %v1116, %v1115
    %v1128 = vpack.c.bf16 %v1118, %v1117
    %v1129 = vpack.c.bf16 %v1120, %v1119
    %v1130 = vpack.c.bf16 %v1122, %v1121
    %s1131 = scalar_lea.vmem %s5, 32
    %v1132 = vld [vmem:[%s1131] sm:$0xf]
    %v1133 = vld [vmem:[%s1131 + $0x4] sm:$0xf]
    %v1134 = vld [vmem:[%s1131 + $0x8] sm:$0xf]
    %v1135 = vld [vmem:[%s1131 + $0xc] sm:$0xf]
    %v1136 = vld [vmem:[%s1131 + $0x10] sm:$0xf]
    %v1137 = vld [vmem:[%s1131 + $0x14] sm:$0xf]
    %v1138 = vld [vmem:[%s1131 + $0x18] sm:$0xf]
    %v1139 = vld [vmem:[%s1131 + $0x1c] sm:$0xf]
    %s1140 = scalar_lea.vmem %s6, 1
    %v1141 = vld [vmem:[%s1140] sm:$0x1]
    %v1143 = vlaneseq
    %v1144 = vshrl.u32 %v1143, 7
    %v1145 = vsub.s32 0, %v1144
    %v1146 = vrot.slane %v1141, %v1145
    %v1156 = vunpack.c.l.b16 %v1132
    %v1157 = vunpack.c.l.b16 %v1133
    %v1158 = vunpack.c.l.b16 %v1134
    %v1159 = vunpack.c.l.b16 %v1135
    %v1160 = vunpack.c.l.b16 %v1136
    %v1161 = vunpack.c.l.b16 %v1137
    %v1162 = vunpack.c.l.b16 %v1138
    %v1163 = vunpack.c.l.b16 %v1139
    %v1164 = vpack.c.b16 %v1157, %v1156
    %v1165 = vpack.c.b16 %v1159, %v1158
    %v1166 = vpack.c.b16 %v1161, %v1160
    %v1167 = vpack.c.b16 %v1163, %v1162
    %v1173 = vsel %vm249, %v1123, 0
    %v1176 = vsel %vm249, %v1124, 0
    %v1179 = vsel %vm249, %v1125, 0
    %v1182 = vsel %vm249, %v1126, 0
    %v1185 = vsel %vm249, %v1127, 0
    %v1188 = vsel %vm249, %v1128, 0
    %v1191 = vsel %vm249, %v1129, 0
    %v1194 = vsel %vm249, %v1130, 0
    %1196 = vmatprep.subr.bf16.mxu0 0
    %1197 = vmatpush1.bf16.msra.mxu0 0
    %1198 = vmatprep.subr.bf16.mxu0 0
    %1199 = vmatpush1.bf16.msra.mxu0 0
    %1200 = vmatprep.subr.bf16.mxu0 0
    %1201 = vmatpush1.bf16.msra.mxu0 0
    %1202 = vmatprep.subr.bf16.mxu0 0
    %1203 = vmatpush1.bf16.msra.mxu0 0
    %1204 = vmatprep.subr.bf16.mxu0 0
    %1205 = vmatpush1.bf16.msra.mxu0 %v1167
    %1206 = vmatprep.subr.bf16.mxu0 0
    %1207 = vmatpush1.bf16.msra.mxu0 %v1166
    %1208 = vmatprep.subr.bf16.mxu0 0
    %1209 = vmatpush1.bf16.msra.mxu0 %v1165
    %1210 = vmatprep.subr.bf16.mxu0 0
    %1211 = vmatpush1.bf16.msra.mxu0 %v1164
    %1212 = vmatprep.subr.bf16.mxu0 0
    %1213 = vmatpush2.bf16.msra.mxu0 0
    %1214 = vmatprep.subr.bf16.mxu0 0
    %1215 = vmatpush2.bf16.msra.mxu0 0
    %1216 = vmatprep.subr.bf16.mxu0 0
    %1217 = vmatpush2.bf16.msra.mxu0 0
    %1218 = vmatprep.subr.bf16.mxu0 0
    %1219 = vmatpush2.bf16.msra.mxu0 0
    %1220 = vmatprep.subr.bf16.mxu0 0
    %1221 = vmatpush2.bf16.msra.mxu0 0
    %1222 = vmatprep.subr.bf16.mxu0 0
    %1223 = vmatpush2.bf16.msra.mxu0 0
    %1224 = vmatprep.subr.bf16.mxu0 0
    %1225 = vmatpush2.bf16.msra.mxu0 0
    %1226 = vmatprep.subr.bf16.mxu0 0
    %1227 = vmatpush2.bf16.msra.mxu0 0
    %1228 = vmatprep.mubr.bf16.mxu0 0
    %1229 = vmatmul.mubr.bf16.gmra.mxu0 %v1173
    %v1230 = vpop.f32.mrf.mxu0
    %v1231 = vadd.f32 %v1146, %v1230
    %v1232 = vpop.f32.mrf.mxu0
    %v1233 = vpop.f32.mrf.mxu0
    %v1234 = vadd.f32 %v1146, %v1233
    %v1235 = vpop.f32.mrf.mxu0
    %1236 = vmatprep.mubr.bf16.mxu0 0
    %1237 = vmatmul.mubr.bf16.gmra.mxu0 %v1176
    %v1238 = vpop.f32.mrf.mxu0
    %v1239 = vadd.f32 %v1146, %v1238
    %v1240 = vpop.f32.mrf.mxu0
    %v1241 = vpop.f32.mrf.mxu0
    %v1242 = vadd.f32 %v1146, %v1241
    %v1243 = vpop.f32.mrf.mxu0
    %1244 = vmatprep.mubr.bf16.mxu0 0
    %1245 = vmatmul.mubr.bf16.gmra.mxu0 %v1179
    %v1246 = vpop.f32.mrf.mxu0
    %v1247 = vadd.f32 %v1146, %v1246
    %v1248 = vpop.f32.mrf.mxu0
    %v1249 = vpop.f32.mrf.mxu0
    %v1250 = vadd.f32 %v1146, %v1249
    %v1251 = vpop.f32.mrf.mxu0
    %1252 = vmatprep.mubr.bf16.mxu0 0
    %1253 = vmatmul.mubr.bf16.gmra.mxu0 %v1182
    %v1254 = vpop.f32.mrf.mxu0
    %v1255 = vadd.f32 %v1146, %v1254
    %v1256 = vpop.f32.mrf.mxu0
    %v1257 = vpop.f32.mrf.mxu0
    %v1258 = vadd.f32 %v1146, %v1257
    %v1259 = vpop.f32.mrf.mxu0
    %1260 = vmatprep.mubr.bf16.mxu0 0
    %1261 = vmatmul.mubr.bf16.gmra.mxu0 %v1185
    %v1262 = vpop.f32.mrf.mxu0
    %v1263 = vadd.f32 %v1146, %v1262
    %v1264 = vpop.f32.mrf.mxu0
    %v1265 = vpop.f32.mrf.mxu0
    %v1266 = vadd.f32 %v1146, %v1265
    %v1267 = vpop.f32.mrf.mxu0
    %1268 = vmatprep.mubr.bf16.mxu0 0
    %1269 = vmatmul.mubr.bf16.gmra.mxu0 %v1188
    %v1270 = vpop.f32.mrf.mxu0
    %v1271 = vadd.f32 %v1146, %v1270
    %v1272 = vpop.f32.mrf.mxu0
    %v1273 = vpop.f32.mrf.mxu0
    %v1274 = vadd.f32 %v1146, %v1273
    %v1275 = vpop.f32.mrf.mxu0
    %1276 = vmatprep.mubr.bf16.mxu0 0
    %1277 = vmatmul.mubr.bf16.gmra.mxu0 %v1191
    %v1278 = vpop.f32.mrf.mxu0
    %v1279 = vadd.f32 %v1146, %v1278
    %v1280 = vpop.f32.mrf.mxu0
    %v1281 = vpop.f32.mrf.mxu0
    %v1282 = vadd.f32 %v1146, %v1281
    %v1283 = vpop.f32.mrf.mxu0
    %1284 = vmatprep.mubr.bf16.mxu0 0
    %1285 = vmatmul.mubr.bf16.gmra.mxu0 %v1194
    %v1286 = vpop.f32.mrf.mxu0
    %v1287 = vadd.f32 %v1146, %v1286
    %v1288 = vpop.f32.mrf.mxu0
    %v1289 = vpop.f32.mrf.mxu0
    %v1290 = vadd.f32 %v1146, %v1289
    %v1291 = vpop.f32.mrf.mxu0
    %1292 = vdwg.mxu0
    %v1293 = vand.u32 2147483647, %v1231
    %v1294 = vand.u32 2147483647, %v1234
    %v1295 = vand.u32 2147483647, %v1239
    %v1296 = vand.u32 2147483647, %v1242
    %v1297 = vand.u32 2147483647, %v1247
    %v1298 = vand.u32 2147483647, %v1250
    %v1299 = vand.u32 2147483647, %v1255
    %v1300 = vand.u32 2147483647, %v1258
    %v1301 = vand.u32 2147483647, %v1263
    %v1302 = vand.u32 2147483647, %v1266
    %v1303 = vand.u32 2147483647, %v1271
    %v1304 = vand.u32 2147483647, %v1274
    %v1305 = vand.u32 2147483647, %v1279
    %v1306 = vand.u32 2147483647, %v1282
    %v1307 = vand.u32 2147483647, %v1287
    %v1308 = vand.u32 2147483647, %v1290
    %v1309 = vmul.f32 %v1293, 0.14476483
    %v1310 = vmul.f32 %v1294, 0.14476483
    %v1311 = vmul.f32 %v1295, 0.14476483
    %v1312 = vmul.f32 %v1296, 0.14476483
    %v1313 = vmul.f32 %v1297, 0.14476483
    %v1314 = vmul.f32 %v1298, 0.14476483
    %v1315 = vmul.f32 %v1299, 0.14476483
    %v1316 = vmul.f32 %v1300, 0.14476483
    %v1317 = vmul.f32 %v1301, 0.14476483
    %v1318 = vmul.f32 %v1302, 0.14476483
    %v1319 = vmul.f32 %v1303, 0.14476483
    %v1320 = vmul.f32 %v1304, 0.14476483
    %v1321 = vmul.f32 %v1305, 0.14476483
    %v1322 = vmul.f32 %v1306, 0.14476483
    %v1323 = vmul.f32 %v1307, 0.14476483
    %v1324 = vmul.f32 %v1308, 0.14476483
    %v1325 = vadd.f32 %v1309, 1.0
    %v1326 = vadd.f32 %v1310, 1.0
    %v1327 = vadd.f32 %v1311, 1.0
    %v1328 = vadd.f32 %v1312, 1.0
    %v1329 = vadd.f32 %v1313, 1.0
    %v1330 = vadd.f32 %v1314, 1.0
    %v1331 = vadd.f32 %v1315, 1.0
    %v1332 = vadd.f32 %v1316, 1.0
    %v1333 = vadd.f32 %v1317, 1.0
    %v1334 = vadd.f32 %v1318, 1.0
    %v1335 = vadd.f32 %v1319, 1.0
    %v1336 = vadd.f32 %v1320, 1.0
    %v1337 = vadd.f32 %v1321, 1.0
    %v1338 = vadd.f32 %v1322, 1.0
    %v1339 = vadd.f32 %v1323, 1.0
    %v1340 = vadd.f32 %v1324, 1.0
    %v1341 = vrcp.pop %v1325
    %v1342 = vmul.f32 %v1231, %v1341
    %v1343 = vrcp.pop %v1326
    %v1344 = vmul.f32 %v1234, %v1343
    %v1345 = vrcp.pop %v1327
    %v1346 = vmul.f32 %v1239, %v1345
    %v1347 = vrcp.pop %v1328
    %v1348 = vmul.f32 %v1242, %v1347
    %v1349 = vrcp.pop %v1329
    %v1350 = vmul.f32 %v1247, %v1349
    %v1351 = vrcp.pop %v1330
    %v1352 = vmul.f32 %v1250, %v1351
    %v1353 = vrcp.pop %v1331
    %v1354 = vmul.f32 %v1255, %v1353
    %v1355 = vrcp.pop %v1332
    %v1356 = vmul.f32 %v1258, %v1355
    %v1357 = vrcp.pop %v1333
    %v1358 = vmul.f32 %v1263, %v1357
    %v1359 = vrcp.pop %v1334
    %v1360 = vmul.f32 %v1266, %v1359
    %v1361 = vrcp.pop %v1335
    %v1362 = vmul.f32 %v1271, %v1361
    %v1363 = vrcp.pop %v1336
    %v1364 = vmul.f32 %v1274, %v1363
    %v1365 = vrcp.pop %v1337
    %v1366 = vmul.f32 %v1279, %v1365
    %v1367 = vrcp.pop %v1338
    %v1368 = vmul.f32 %v1282, %v1367
    %v1369 = vrcp.pop %v1339
    %v1370 = vmul.f32 %v1287, %v1369
    %v1371 = vrcp.pop %v1340
    %v1372 = vmul.f32 %v1290, %v1371
    %v1373 = vadd.f32 %v635, %v1342
    %v1374 = vadd.f32 %v636, %v1344
    %v1375 = vadd.f32 %v637, %v1346
    %v1376 = vadd.f32 %v638, %v1348
    %v1377 = vadd.f32 %v639, %v1350
    %v1378 = vadd.f32 %v640, %v1352
    %v1379 = vadd.f32 %v641, %v1354
    %v1380 = vadd.f32 %v642, %v1356
    %v1381 = vadd.f32 %v643, %v1358
    %v1382 = vadd.f32 %v644, %v1360
    %v1383 = vadd.f32 %v645, %v1362
    %v1384 = vadd.f32 %v646, %v1364
    %v1385 = vadd.f32 %v647, %v1366
    %v1386 = vadd.f32 %v648, %v1368
    %v1387 = vadd.f32 %v649, %v1370
    %v1388 = vadd.f32 %v650, %v1372
    %v1389 = vmul.f32 %v1342, 1.442695
    %v1390 = vpow.pop %v1389
    %v1391 = vmul.f32 %v1344, 1.442695
    %v1392 = vpow.pop %v1391
    %v1393 = vmul.f32 %v1346, 1.442695
    %v1394 = vpow.pop %v1393
    %v1395 = vmul.f32 %v1348, 1.442695
    %v1396 = vpow.pop %v1395
    %v1397 = vmul.f32 %v1350, 1.442695
    %v1398 = vpow.pop %v1397
    %v1399 = vmul.f32 %v1352, 1.442695
    %v1400 = vpow.pop %v1399
    %v1401 = vmul.f32 %v1354, 1.442695
    %v1402 = vpow.pop %v1401
    %v1403 = vmul.f32 %v1356, 1.442695
    %v1404 = vpow.pop %v1403
    %v1405 = vmul.f32 %v1358, 1.442695
    %v1406 = vpow.pop %v1405
    %v1407 = vmul.f32 %v1360, 1.442695
    %v1408 = vpow.pop %v1407
    %v1409 = vmul.f32 %v1362, 1.442695
    %v1410 = vpow.pop %v1409
    %v1411 = vmul.f32 %v1364, 1.442695
    %v1412 = vpow.pop %v1411
    %v1413 = vmul.f32 %v1366, 1.442695
    %v1414 = vpow.pop %v1413
    %v1415 = vmul.f32 %v1368, 1.442695
    %v1416 = vpow.pop %v1415
    %v1417 = vmul.f32 %v1370, 1.442695
    %v1418 = vpow.pop %v1417
    %v1419 = vmul.f32 %v1372, 1.442695
    %v1420 = vpow.pop %v1419
    %1437 = vrot.lane.b32.xlu0 %v1390, 120
    %v1438 = vpop.permute.xlu0 %1437
    %1439 = vrot.lane.b32.xlu0 %v1392, 120
    %v1440 = vpop.permute.xlu0 %1439
    %1441 = vrot.lane.b32.xlu0 %v1394, 120
    %v1442 = vpop.permute.xlu0 %1441
    %1443 = vrot.lane.b32.xlu0 %v1396, 120
    %v1444 = vpop.permute.xlu0 %1443
    %1445 = vrot.lane.b32.xlu0 %v1398, 120
    %v1446 = vpop.permute.xlu0 %1445
    %1447 = vrot.lane.b32.xlu0 %v1400, 120
    %v1448 = vpop.permute.xlu0 %1447
    %1449 = vrot.lane.b32.xlu0 %v1402, 120
    %v1450 = vpop.permute.xlu0 %1449
    %1451 = vrot.lane.b32.xlu0 %v1404, 120
    %v1452 = vpop.permute.xlu0 %1451
    %1453 = vrot.lane.b32.xlu0 %v1406, 120
    %v1454 = vpop.permute.xlu0 %1453
    %1455 = vrot.lane.b32.xlu0 %v1408, 120
    %v1456 = vpop.permute.xlu0 %1455
    %1457 = vrot.lane.b32.xlu0 %v1410, 120
    %v1458 = vpop.permute.xlu0 %1457
    %1459 = vrot.lane.b32.xlu0 %v1412, 120
    %v1460 = vpop.permute.xlu0 %1459
    %1461 = vrot.lane.b32.xlu0 %v1414, 120
    %v1462 = vpop.permute.xlu0 %1461
    %1463 = vrot.lane.b32.xlu0 %v1416, 120
    %v1464 = vpop.permute.xlu0 %1463
    %1465 = vrot.lane.b32.xlu0 %v1418, 120
    %v1466 = vpop.permute.xlu0 %1465
    %1467 = vrot.lane.b32.xlu0 %v1420, 120
    %v1468 = vpop.permute.xlu0 %1467
    %v1485 = vmul.f32 %v763, %v1438
    %v1486 = vmul.f32 %v764, %v1440
    %v1487 = vmul.f32 %v765, %v1442
    %v1488 = vmul.f32 %v766, %v1444
    %v1489 = vmul.f32 %v767, %v1446
    %v1490 = vmul.f32 %v768, %v1448
    %v1491 = vmul.f32 %v769, %v1450
    %v1492 = vmul.f32 %v770, %v1452
    %v1493 = vmul.f32 %v771, %v1454
    %v1494 = vmul.f32 %v772, %v1456
    %v1495 = vmul.f32 %v773, %v1458
    %v1496 = vmul.f32 %v774, %v1460
    %v1497 = vmul.f32 %v775, %v1462
    %v1498 = vmul.f32 %v776, %v1464
    %v1499 = vmul.f32 %v777, %v1466
    %v1500 = vmul.f32 %v778, %v1468
    %v1501 = vadd.f32 %v1485, %v1231
    %v1502 = vadd.f32 %v1486, %v1234
    %v1503 = vadd.f32 %v1487, %v1239
    %v1504 = vadd.f32 %v1488, %v1242
    %v1505 = vadd.f32 %v1489, %v1247
    %v1506 = vadd.f32 %v1490, %v1250
    %v1507 = vadd.f32 %v1491, %v1255
    %v1508 = vadd.f32 %v1492, %v1258
    %v1509 = vadd.f32 %v1493, %v1263
    %v1510 = vadd.f32 %v1494, %v1266
    %v1511 = vadd.f32 %v1495, %v1271
    %v1512 = vadd.f32 %v1496, %v1274
    %v1513 = vadd.f32 %v1497, %v1279
    %v1514 = vadd.f32 %v1498, %v1282
    %v1515 = vadd.f32 %v1499, %v1287
    %v1516 = vadd.f32 %v1500, %v1290
    %v1517 = vpack.c.bf16 %v1502, %v1501
    %v1518 = vpack.c.bf16 %v1504, %v1503
    %v1519 = vpack.c.bf16 %v1506, %v1505
    %v1520 = vpack.c.bf16 %v1508, %v1507
    %v1521 = vpack.c.bf16 %v1510, %v1509
    %v1522 = vpack.c.bf16 %v1512, %v1511
    %v1523 = vpack.c.bf16 %v1514, %v1513
    %v1524 = vpack.c.bf16 %v1516, %v1515
    %s1525 = scalar_lea.vmem %s1, 8
    %v1526 = vld [vmem:[%s1525] sm:$0xf]
    %s1527 = scalar_lea.vmem %s2, 2
    %v1528 = vld [vmem:[%s1527] sm:$0x1]
    %v1530 = vlaneseq
    %v1531 = vshrl.u32 %v1530, 7
    %v1532 = vsub.s32 0, %v1531
    %v1533 = vrot.slane %v1528, %v1532
    %v1536 = vsel %vm60, %v1517, 0
    %v1539 = vsel %vm60, %v1518, 0
    %v1542 = vsel %vm60, %v1519, 0
    %v1545 = vsel %vm60, %v1520, 0
    %v1548 = vsel %vm60, %v1521, 0
    %v1551 = vsel %vm60, %v1522, 0
    %v1554 = vsel %vm60, %v1523, 0
    %v1557 = vsel %vm60, %v1524, 0
    %v1560 = vsel %vm85, %v1526, 0
    %1562 = vmatprep.subr.bf16.mxu0 0
    %1563 = vmatpush1.bf16.msra.mxu0 0
    %1564 = vmatprep.subr.bf16.mxu0 0
    %1565 = vmatpush1.bf16.msra.mxu0 0
    %1566 = vmatprep.subr.bf16.mxu0 0
    %1567 = vmatpush1.bf16.msra.mxu0 0
    %1568 = vmatprep.subr.bf16.mxu0 0
    %1569 = vmatpush1.bf16.msra.mxu0 0
    %1570 = vmatprep.subr.bf16.mxu0 0
    %1571 = vmatpush1.bf16.msra.mxu0 0
    %1572 = vmatprep.subr.bf16.mxu0 0
    %1573 = vmatpush1.bf16.msra.mxu0 0
    %1574 = vmatprep.subr.bf16.mxu0 0
    %1575 = vmatpush1.bf16.msra.mxu0 0
    %1576 = vmatprep.subr.bf16.mxu0 0
    %1577 = vmatpush1.bf16.msra.mxu0 %v1560
    %1578 = vmatprep.subr.bf16.mxu0 0
    %1579 = vmatpush2.bf16.msra.mxu0 0
    %1580 = vmatprep.subr.bf16.mxu0 0
    %1581 = vmatpush2.bf16.msra.mxu0 0
    %1582 = vmatprep.subr.bf16.mxu0 0
    %1583 = vmatpush2.bf16.msra.mxu0 0
    %1584 = vmatprep.subr.bf16.mxu0 0
    %1585 = vmatpush2.bf16.msra.mxu0 0
    %1586 = vmatprep.subr.bf16.mxu0 0
    %1587 = vmatpush2.bf16.msra.mxu0 0
    %1588 = vmatprep.subr.bf16.mxu0 0
    %1589 = vmatpush2.bf16.msra.mxu0 0
    %1590 = vmatprep.subr.bf16.mxu0 0
    %1591 = vmatpush2.bf16.msra.mxu0 0
    %1592 = vmatprep.subr.bf16.mxu0 0
    %1593 = vmatpush2.bf16.msra.mxu0 0
    %1594 = vmatprep.mubr.bf16.mxu0 0
    %1595 = vmatmul.mubr.bf16.gmra.mxu0 %v1536
    %v1596 = vpop.f32.mrf.mxu0
    %v1597 = vadd.f32 %v1533, %v1596
    %v1598 = vpop.f32.mrf.mxu0
    %v1599 = vpop.f32.mrf.mxu0
    %v1600 = vadd.f32 %v1533, %v1599
    %v1601 = vpop.f32.mrf.mxu0
    %1602 = vmatprep.mubr.bf16.mxu0 0
    %1603 = vmatmul.mubr.bf16.gmra.mxu0 %v1539
    %v1604 = vpop.f32.mrf.mxu0
    %v1605 = vadd.f32 %v1533, %v1604
    %v1606 = vpop.f32.mrf.mxu0
    %v1607 = vpop.f32.mrf.mxu0
    %v1608 = vadd.f32 %v1533, %v1607
    %v1609 = vpop.f32.mrf.mxu0
    %1610 = vmatprep.mubr.bf16.mxu0 0
    %1611 = vmatmul.mubr.bf16.gmra.mxu0 %v1542
    %v1612 = vpop.f32.mrf.mxu0
    %v1613 = vadd.f32 %v1533, %v1612
    %v1614 = vpop.f32.mrf.mxu0
    %v1615 = vpop.f32.mrf.mxu0
    %v1616 = vadd.f32 %v1533, %v1615
    %v1617 = vpop.f32.mrf.mxu0
    %1618 = vmatprep.mubr.bf16.mxu0 0
    %1619 = vmatmul.mubr.bf16.gmra.mxu0 %v1545
    %v1620 = vpop.f32.mrf.mxu0
    %v1621 = vadd.f32 %v1533, %v1620
    %v1622 = vpop.f32.mrf.mxu0
    %v1623 = vpop.f32.mrf.mxu0
    %v1624 = vadd.f32 %v1533, %v1623
    %v1625 = vpop.f32.mrf.mxu0
    %1626 = vmatprep.mubr.bf16.mxu0 0
    %1627 = vmatmul.mubr.bf16.gmra.mxu0 %v1548
    %v1628 = vpop.f32.mrf.mxu0
    %v1629 = vadd.f32 %v1533, %v1628
    %v1630 = vpop.f32.mrf.mxu0
    %v1631 = vpop.f32.mrf.mxu0
    %v1632 = vadd.f32 %v1533, %v1631
    %v1633 = vpop.f32.mrf.mxu0
    %1634 = vmatprep.mubr.bf16.mxu0 0
    %1635 = vmatmul.mubr.bf16.gmra.mxu0 %v1551
    %v1636 = vpop.f32.mrf.mxu0
    %v1637 = vadd.f32 %v1533, %v1636
    %v1638 = vpop.f32.mrf.mxu0
    %v1639 = vpop.f32.mrf.mxu0
    %v1640 = vadd.f32 %v1533, %v1639
    %v1641 = vpop.f32.mrf.mxu0
    %1642 = vmatprep.mubr.bf16.mxu0 0
    %1643 = vmatmul.mubr.bf16.gmra.mxu0 %v1554
    %v1644 = vpop.f32.mrf.mxu0
    %v1645 = vadd.f32 %v1533, %v1644
    %v1646 = vpop.f32.mrf.mxu0
    %v1647 = vpop.f32.mrf.mxu0
    %v1648 = vadd.f32 %v1533, %v1647
    %v1649 = vpop.f32.mrf.mxu0
    %1650 = vmatprep.mubr.bf16.mxu0 0
    %1651 = vmatmul.mubr.bf16.gmra.mxu0 %v1557
    %v1652 = vpop.f32.mrf.mxu0
    %v1653 = vadd.f32 %v1533, %v1652
    %v1654 = vpop.f32.mrf.mxu0
    %v1655 = vpop.f32.mrf.mxu0
    %v1656 = vadd.f32 %v1533, %v1655
    %v1657 = vpop.f32.mrf.mxu0
    %1658 = vdwg.mxu0
    %v1659 = vmax.f32 %v1597, 0.0
    %v1660 = vmax.f32 %v1600, 0.0
    %v1661 = vmax.f32 %v1605, 0.0
    %v1662 = vmax.f32 %v1608, 0.0
    %v1663 = vmax.f32 %v1613, 0.0
    %v1664 = vmax.f32 %v1616, 0.0
    %v1665 = vmax.f32 %v1621, 0.0
    %v1666 = vmax.f32 %v1624, 0.0
    %v1667 = vmax.f32 %v1629, 0.0
    %v1668 = vmax.f32 %v1632, 0.0
    %v1669 = vmax.f32 %v1637, 0.0
    %v1670 = vmax.f32 %v1640, 0.0
    %v1671 = vmax.f32 %v1645, 0.0
    %v1672 = vmax.f32 %v1648, 0.0
    %v1673 = vmax.f32 %v1653, 0.0
    %v1674 = vmax.f32 %v1656, 0.0
    %v1675 = vpack.c.bf16 %v1660, %v1659
    %v1676 = vpack.c.bf16 %v1662, %v1661
    %v1677 = vpack.c.bf16 %v1664, %v1663
    %v1678 = vpack.c.bf16 %v1666, %v1665
    %v1679 = vpack.c.bf16 %v1668, %v1667
    %v1680 = vpack.c.bf16 %v1670, %v1669
    %v1681 = vpack.c.bf16 %v1672, %v1671
    %v1682 = vpack.c.bf16 %v1674, %v1673
    %s1683 = scalar_lea.vmem %s3, 64
    %v1684 = vld [vmem:[%s1683] sm:$0xf]
    %v1685 = vld [vmem:[%s1683 + $0x4] sm:$0xf]
    %v1686 = vld [vmem:[%s1683 + $0x8] sm:$0xf]
    %v1687 = vld [vmem:[%s1683 + $0xc] sm:$0xf]
    %v1688 = vld [vmem:[%s1683 + $0x10] sm:$0xf]
    %v1689 = vld [vmem:[%s1683 + $0x14] sm:$0xf]
    %v1690 = vld [vmem:[%s1683 + $0x18] sm:$0xf]
    %v1691 = vld [vmem:[%s1683 + $0x1c] sm:$0xf]
    %s1692 = scalar_lea.vmem %s4, 2
    %v1693 = vld [vmem:[%s1692] sm:$0x1]
    %v1695 = vlaneseq
    %v1696 = vshrl.u32 %v1695, 7
    %v1697 = vsub.s32 0, %v1696
    %v1698 = vrot.slane %v1693, %v1697
    %v1708 = vunpack.c.l.b16 %v1684
    %v1709 = vunpack.c.l.b16 %v1685
    %v1710 = vunpack.c.l.b16 %v1686
    %v1711 = vunpack.c.l.b16 %v1687
    %v1712 = vunpack.c.l.b16 %v1688
    %v1713 = vunpack.c.l.b16 %v1689
    %v1714 = vunpack.c.l.b16 %v1690
    %v1715 = vunpack.c.l.b16 %v1691
    %v1716 = vpack.c.b16 %v1709, %v1708
    %v1717 = vpack.c.b16 %v1711, %v1710
    %v1718 = vpack.c.b16 %v1713, %v1712
    %v1719 = vpack.c.b16 %v1715, %v1714
    %v1725 = vsel %vm249, %v1675, 0
    %v1728 = vsel %vm249, %v1676, 0
    %v1731 = vsel %vm249, %v1677, 0
    %v1734 = vsel %vm249, %v1678, 0
    %v1737 = vsel %vm249, %v1679, 0
    %v1740 = vsel %vm249, %v1680, 0
    %v1743 = vsel %vm249, %v1681, 0
    %v1746 = vsel %vm249, %v1682, 0
    %1748 = vmatprep.subr.bf16.mxu0 0
    %1749 = vmatpush1.bf16.msra.mxu0 0
    %1750 = vmatprep.subr.bf16.mxu0 0
    %1751 = vmatpush1.bf16.msra.mxu0 0
    %1752 = vmatprep.subr.bf16.mxu0 0
    %1753 = vmatpush1.bf16.msra.mxu0 0
    %1754 = vmatprep.subr.bf16.mxu0 0
    %1755 = vmatpush1.bf16.msra.mxu0 0
    %1756 = vmatprep.subr.bf16.mxu0 0
    %1757 = vmatpush1.bf16.msra.mxu0 %v1719
    %1758 = vmatprep.subr.bf16.mxu0 0
    %1759 = vmatpush1.bf16.msra.mxu0 %v1718
    %1760 = vmatprep.subr.bf16.mxu0 0
    %1761 = vmatpush1.bf16.msra.mxu0 %v1717
    %1762 = vmatprep.subr.bf16.mxu0 0
    %1763 = vmatpush1.bf16.msra.mxu0 %v1716
    %1764 = vmatprep.subr.bf16.mxu0 0
    %1765 = vmatpush2.bf16.msra.mxu0 0
    %1766 = vmatprep.subr.bf16.mxu0 0
    %1767 = vmatpush2.bf16.msra.mxu0 0
    %1768 = vmatprep.subr.bf16.mxu0 0
    %1769 = vmatpush2.bf16.msra.mxu0 0
    %1770 = vmatprep.subr.bf16.mxu0 0
    %1771 = vmatpush2.bf16.msra.mxu0 0
    %1772 = vmatprep.subr.bf16.mxu0 0
    %1773 = vmatpush2.bf16.msra.mxu0 0
    %1774 = vmatprep.subr.bf16.mxu0 0
    %1775 = vmatpush2.bf16.msra.mxu0 0
    %1776 = vmatprep.subr.bf16.mxu0 0
    %1777 = vmatpush2.bf16.msra.mxu0 0
    %1778 = vmatprep.subr.bf16.mxu0 0
    %1779 = vmatpush2.bf16.msra.mxu0 0
    %1780 = vmatprep.mubr.bf16.mxu0 0
    %1781 = vmatmul.mubr.bf16.gmra.mxu0 %v1725
    %v1782 = vpop.f32.mrf.mxu0
    %v1783 = vadd.f32 %v1698, %v1782
    %v1784 = vpop.f32.mrf.mxu0
    %v1785 = vpop.f32.mrf.mxu0
    %v1786 = vadd.f32 %v1698, %v1785
    %v1787 = vpop.f32.mrf.mxu0
    %1788 = vmatprep.mubr.bf16.mxu0 0
    %1789 = vmatmul.mubr.bf16.gmra.mxu0 %v1728
    %v1790 = vpop.f32.mrf.mxu0
    %v1791 = vadd.f32 %v1698, %v1790
    %v1792 = vpop.f32.mrf.mxu0
    %v1793 = vpop.f32.mrf.mxu0
    %v1794 = vadd.f32 %v1698, %v1793
    %v1795 = vpop.f32.mrf.mxu0
    %1796 = vmatprep.mubr.bf16.mxu0 0
    %1797 = vmatmul.mubr.bf16.gmra.mxu0 %v1731
    %v1798 = vpop.f32.mrf.mxu0
    %v1799 = vadd.f32 %v1698, %v1798
    %v1800 = vpop.f32.mrf.mxu0
    %v1801 = vpop.f32.mrf.mxu0
    %v1802 = vadd.f32 %v1698, %v1801
    %v1803 = vpop.f32.mrf.mxu0
    %1804 = vmatprep.mubr.bf16.mxu0 0
    %1805 = vmatmul.mubr.bf16.gmra.mxu0 %v1734
    %v1806 = vpop.f32.mrf.mxu0
    %v1807 = vadd.f32 %v1698, %v1806
    %v1808 = vpop.f32.mrf.mxu0
    %v1809 = vpop.f32.mrf.mxu0
    %v1810 = vadd.f32 %v1698, %v1809
    %v1811 = vpop.f32.mrf.mxu0
    %1812 = vmatprep.mubr.bf16.mxu0 0
    %1813 = vmatmul.mubr.bf16.gmra.mxu0 %v1737
    %v1814 = vpop.f32.mrf.mxu0
    %v1815 = vadd.f32 %v1698, %v1814
    %v1816 = vpop.f32.mrf.mxu0
    %v1817 = vpop.f32.mrf.mxu0
    %v1818 = vadd.f32 %v1698, %v1817
    %v1819 = vpop.f32.mrf.mxu0
    %1820 = vmatprep.mubr.bf16.mxu0 0
    %1821 = vmatmul.mubr.bf16.gmra.mxu0 %v1740
    %v1822 = vpop.f32.mrf.mxu0
    %v1823 = vadd.f32 %v1698, %v1822
    %v1824 = vpop.f32.mrf.mxu0
    %v1825 = vpop.f32.mrf.mxu0
    %v1826 = vadd.f32 %v1698, %v1825
    %v1827 = vpop.f32.mrf.mxu0
    %1828 = vmatprep.mubr.bf16.mxu0 0
    %1829 = vmatmul.mubr.bf16.gmra.mxu0 %v1743
    %v1830 = vpop.f32.mrf.mxu0
    %v1831 = vadd.f32 %v1698, %v1830
    %v1832 = vpop.f32.mrf.mxu0
    %v1833 = vpop.f32.mrf.mxu0
    %v1834 = vadd.f32 %v1698, %v1833
    %v1835 = vpop.f32.mrf.mxu0
    %1836 = vmatprep.mubr.bf16.mxu0 0
    %1837 = vmatmul.mubr.bf16.gmra.mxu0 %v1746
    %v1838 = vpop.f32.mrf.mxu0
    %v1839 = vadd.f32 %v1698, %v1838
    %v1840 = vpop.f32.mrf.mxu0
    %v1841 = vpop.f32.mrf.mxu0
    %v1842 = vadd.f32 %v1698, %v1841
    %v1843 = vpop.f32.mrf.mxu0
    %1844 = vdwg.mxu0
    %v1845 = vmax.f32 %v1783, 0.0
    %v1846 = vmax.f32 %v1786, 0.0
    %v1847 = vmax.f32 %v1791, 0.0
    %v1848 = vmax.f32 %v1794, 0.0
    %v1849 = vmax.f32 %v1799, 0.0
    %v1850 = vmax.f32 %v1802, 0.0
    %v1851 = vmax.f32 %v1807, 0.0
    %v1852 = vmax.f32 %v1810, 0.0
    %v1853 = vmax.f32 %v1815, 0.0
    %v1854 = vmax.f32 %v1818, 0.0
    %v1855 = vmax.f32 %v1823, 0.0
    %v1856 = vmax.f32 %v1826, 0.0
    %v1857 = vmax.f32 %v1831, 0.0
    %v1858 = vmax.f32 %v1834, 0.0
    %v1859 = vmax.f32 %v1839, 0.0
    %v1860 = vmax.f32 %v1842, 0.0
    %v1861 = vpack.c.bf16 %v1846, %v1845
    %v1862 = vpack.c.bf16 %v1848, %v1847
    %v1863 = vpack.c.bf16 %v1850, %v1849
    %v1864 = vpack.c.bf16 %v1852, %v1851
    %v1865 = vpack.c.bf16 %v1854, %v1853
    %v1866 = vpack.c.bf16 %v1856, %v1855
    %v1867 = vpack.c.bf16 %v1858, %v1857
    %v1868 = vpack.c.bf16 %v1860, %v1859
    %s1869 = scalar_lea.vmem %s5, 64
    %v1870 = vld [vmem:[%s1869] sm:$0xf]
    %v1871 = vld [vmem:[%s1869 + $0x4] sm:$0xf]
    %v1872 = vld [vmem:[%s1869 + $0x8] sm:$0xf]
    %v1873 = vld [vmem:[%s1869 + $0xc] sm:$0xf]
    %v1874 = vld [vmem:[%s1869 + $0x10] sm:$0xf]
    %v1875 = vld [vmem:[%s1869 + $0x14] sm:$0xf]
    %v1876 = vld [vmem:[%s1869 + $0x18] sm:$0xf]
    %v1877 = vld [vmem:[%s1869 + $0x1c] sm:$0xf]
    %s1878 = scalar_lea.vmem %s6, 2
    %v1879 = vld [vmem:[%s1878] sm:$0x1]
    %v1881 = vlaneseq
    %v1882 = vshrl.u32 %v1881, 7
    %v1883 = vsub.s32 0, %v1882
    %v1884 = vrot.slane %v1879, %v1883
    %v1894 = vunpack.c.l.b16 %v1870
    %v1895 = vunpack.c.l.b16 %v1871
    %v1896 = vunpack.c.l.b16 %v1872
    %v1897 = vunpack.c.l.b16 %v1873
    %v1898 = vunpack.c.l.b16 %v1874
    %v1899 = vunpack.c.l.b16 %v1875
    %v1900 = vunpack.c.l.b16 %v1876
    %v1901 = vunpack.c.l.b16 %v1877
    %v1902 = vpack.c.b16 %v1895, %v1894
    %v1903 = vpack.c.b16 %v1897, %v1896
    %v1904 = vpack.c.b16 %v1899, %v1898
    %v1905 = vpack.c.b16 %v1901, %v1900
    %v1911 = vsel %vm249, %v1861, 0
    %v1914 = vsel %vm249, %v1862, 0
    %v1917 = vsel %vm249, %v1863, 0
    %v1920 = vsel %vm249, %v1864, 0
    %v1923 = vsel %vm249, %v1865, 0
    %v1926 = vsel %vm249, %v1866, 0
    %v1929 = vsel %vm249, %v1867, 0
    %v1932 = vsel %vm249, %v1868, 0
    %1934 = vmatprep.subr.bf16.mxu0 0
    %1935 = vmatpush1.bf16.msra.mxu0 0
    %1936 = vmatprep.subr.bf16.mxu0 0
    %1937 = vmatpush1.bf16.msra.mxu0 0
    %1938 = vmatprep.subr.bf16.mxu0 0
    %1939 = vmatpush1.bf16.msra.mxu0 0
    %1940 = vmatprep.subr.bf16.mxu0 0
    %1941 = vmatpush1.bf16.msra.mxu0 0
    %1942 = vmatprep.subr.bf16.mxu0 0
    %1943 = vmatpush1.bf16.msra.mxu0 %v1905
    %1944 = vmatprep.subr.bf16.mxu0 0
    %1945 = vmatpush1.bf16.msra.mxu0 %v1904
    %1946 = vmatprep.subr.bf16.mxu0 0
    %1947 = vmatpush1.bf16.msra.mxu0 %v1903
    %1948 = vmatprep.subr.bf16.mxu0 0
    %1949 = vmatpush1.bf16.msra.mxu0 %v1902
    %1950 = vmatprep.subr.bf16.mxu0 0
    %1951 = vmatpush2.bf16.msra.mxu0 0
    %1952 = vmatprep.subr.bf16.mxu0 0
    %1953 = vmatpush2.bf16.msra.mxu0 0
    %1954 = vmatprep.subr.bf16.mxu0 0
    %1955 = vmatpush2.bf16.msra.mxu0 0
    %1956 = vmatprep.subr.bf16.mxu0 0
    %1957 = vmatpush2.bf16.msra.mxu0 0
    %1958 = vmatprep.subr.bf16.mxu0 0
    %1959 = vmatpush2.bf16.msra.mxu0 0
    %1960 = vmatprep.subr.bf16.mxu0 0
    %1961 = vmatpush2.bf16.msra.mxu0 0
    %1962 = vmatprep.subr.bf16.mxu0 0
    %1963 = vmatpush2.bf16.msra.mxu0 0
    %1964 = vmatprep.subr.bf16.mxu0 0
    %1965 = vmatpush2.bf16.msra.mxu0 0
    %1966 = vmatprep.mubr.bf16.mxu0 0
    %1967 = vmatmul.mubr.bf16.gmra.mxu0 %v1911
    %v1968 = vpop.f32.mrf.mxu0
    %v1969 = vadd.f32 %v1884, %v1968
    %v1970 = vpop.f32.mrf.mxu0
    %v1971 = vpop.f32.mrf.mxu0
    %v1972 = vadd.f32 %v1884, %v1971
    %v1973 = vpop.f32.mrf.mxu0
    %1974 = vmatprep.mubr.bf16.mxu0 0
    %1975 = vmatmul.mubr.bf16.gmra.mxu0 %v1914
    %v1976 = vpop.f32.mrf.mxu0
    %v1977 = vadd.f32 %v1884, %v1976
    %v1978 = vpop.f32.mrf.mxu0
    %v1979 = vpop.f32.mrf.mxu0
    %v1980 = vadd.f32 %v1884, %v1979
    %v1981 = vpop.f32.mrf.mxu0
    %1982 = vmatprep.mubr.bf16.mxu0 0
    %1983 = vmatmul.mubr.bf16.gmra.mxu0 %v1917
    %v1984 = vpop.f32.mrf.mxu0
    %v1985 = vadd.f32 %v1884, %v1984
    %v1986 = vpop.f32.mrf.mxu0
    %v1987 = vpop.f32.mrf.mxu0
    %v1988 = vadd.f32 %v1884, %v1987
    %v1989 = vpop.f32.mrf.mxu0
    %1990 = vmatprep.mubr.bf16.mxu0 0
    %1991 = vmatmul.mubr.bf16.gmra.mxu0 %v1920
    %v1992 = vpop.f32.mrf.mxu0
    %v1993 = vadd.f32 %v1884, %v1992
    %v1994 = vpop.f32.mrf.mxu0
    %v1995 = vpop.f32.mrf.mxu0
    %v1996 = vadd.f32 %v1884, %v1995
    %v1997 = vpop.f32.mrf.mxu0
    %1998 = vmatprep.mubr.bf16.mxu0 0
    %1999 = vmatmul.mubr.bf16.gmra.mxu0 %v1923
    %v2000 = vpop.f32.mrf.mxu0
    %v2001 = vadd.f32 %v1884, %v2000
    %v2002 = vpop.f32.mrf.mxu0
    %v2003 = vpop.f32.mrf.mxu0
    %v2004 = vadd.f32 %v1884, %v2003
    %v2005 = vpop.f32.mrf.mxu0
    %2006 = vmatprep.mubr.bf16.mxu0 0
    %2007 = vmatmul.mubr.bf16.gmra.mxu0 %v1926
    %v2008 = vpop.f32.mrf.mxu0
    %v2009 = vadd.f32 %v1884, %v2008
    %v2010 = vpop.f32.mrf.mxu0
    %v2011 = vpop.f32.mrf.mxu0
    %v2012 = vadd.f32 %v1884, %v2011
    %v2013 = vpop.f32.mrf.mxu0
    %2014 = vmatprep.mubr.bf16.mxu0 0
    %2015 = vmatmul.mubr.bf16.gmra.mxu0 %v1929
    %v2016 = vpop.f32.mrf.mxu0
    %v2017 = vadd.f32 %v1884, %v2016
    %v2018 = vpop.f32.mrf.mxu0
    %v2019 = vpop.f32.mrf.mxu0
    %v2020 = vadd.f32 %v1884, %v2019
    %v2021 = vpop.f32.mrf.mxu0
    %2022 = vmatprep.mubr.bf16.mxu0 0
    %2023 = vmatmul.mubr.bf16.gmra.mxu0 %v1932
    %v2024 = vpop.f32.mrf.mxu0
    %v2025 = vadd.f32 %v1884, %v2024
    %v2026 = vpop.f32.mrf.mxu0
    %v2027 = vpop.f32.mrf.mxu0
    %v2028 = vadd.f32 %v1884, %v2027
    %v2029 = vpop.f32.mrf.mxu0
    %2030 = vdwg.mxu0
    %v2031 = vand.u32 2147483647, %v1969
    %v2032 = vand.u32 2147483647, %v1972
    %v2033 = vand.u32 2147483647, %v1977
    %v2034 = vand.u32 2147483647, %v1980
    %v2035 = vand.u32 2147483647, %v1985
    %v2036 = vand.u32 2147483647, %v1988
    %v2037 = vand.u32 2147483647, %v1993
    %v2038 = vand.u32 2147483647, %v1996
    %v2039 = vand.u32 2147483647, %v2001
    %v2040 = vand.u32 2147483647, %v2004
    %v2041 = vand.u32 2147483647, %v2009
    %v2042 = vand.u32 2147483647, %v2012
    %v2043 = vand.u32 2147483647, %v2017
    %v2044 = vand.u32 2147483647, %v2020
    %v2045 = vand.u32 2147483647, %v2025
    %v2046 = vand.u32 2147483647, %v2028
    %v2047 = vmul.f32 %v2031, 0.14476483
    %v2048 = vmul.f32 %v2032, 0.14476483
    %v2049 = vmul.f32 %v2033, 0.14476483
    %v2050 = vmul.f32 %v2034, 0.14476483
    %v2051 = vmul.f32 %v2035, 0.14476483
    %v2052 = vmul.f32 %v2036, 0.14476483
    %v2053 = vmul.f32 %v2037, 0.14476483
    %v2054 = vmul.f32 %v2038, 0.14476483
    %v2055 = vmul.f32 %v2039, 0.14476483
    %v2056 = vmul.f32 %v2040, 0.14476483
    %v2057 = vmul.f32 %v2041, 0.14476483
    %v2058 = vmul.f32 %v2042, 0.14476483
    %v2059 = vmul.f32 %v2043, 0.14476483
    %v2060 = vmul.f32 %v2044, 0.14476483
    %v2061 = vmul.f32 %v2045, 0.14476483
    %v2062 = vmul.f32 %v2046, 0.14476483
    %v2063 = vadd.f32 %v2047, 1.0
    %v2064 = vadd.f32 %v2048, 1.0
    %v2065 = vadd.f32 %v2049, 1.0
    %v2066 = vadd.f32 %v2050, 1.0
    %v2067 = vadd.f32 %v2051, 1.0
    %v2068 = vadd.f32 %v2052, 1.0
    %v2069 = vadd.f32 %v2053, 1.0
    %v2070 = vadd.f32 %v2054, 1.0
    %v2071 = vadd.f32 %v2055, 1.0
    %v2072 = vadd.f32 %v2056, 1.0
    %v2073 = vadd.f32 %v2057, 1.0
    %v2074 = vadd.f32 %v2058, 1.0
    %v2075 = vadd.f32 %v2059, 1.0
    %v2076 = vadd.f32 %v2060, 1.0
    %v2077 = vadd.f32 %v2061, 1.0
    %v2078 = vadd.f32 %v2062, 1.0
    %v2079 = vrcp.pop %v2063
    %v2080 = vmul.f32 %v1969, %v2079
    %v2081 = vrcp.pop %v2064
    %v2082 = vmul.f32 %v1972, %v2081
    %v2083 = vrcp.pop %v2065
    %v2084 = vmul.f32 %v1977, %v2083
    %v2085 = vrcp.pop %v2066
    %v2086 = vmul.f32 %v1980, %v2085
    %v2087 = vrcp.pop %v2067
    %v2088 = vmul.f32 %v1985, %v2087
    %v2089 = vrcp.pop %v2068
    %v2090 = vmul.f32 %v1988, %v2089
    %v2091 = vrcp.pop %v2069
    %v2092 = vmul.f32 %v1993, %v2091
    %v2093 = vrcp.pop %v2070
    %v2094 = vmul.f32 %v1996, %v2093
    %v2095 = vrcp.pop %v2071
    %v2096 = vmul.f32 %v2001, %v2095
    %v2097 = vrcp.pop %v2072
    %v2098 = vmul.f32 %v2004, %v2097
    %v2099 = vrcp.pop %v2073
    %v2100 = vmul.f32 %v2009, %v2099
    %v2101 = vrcp.pop %v2074
    %v2102 = vmul.f32 %v2012, %v2101
    %v2103 = vrcp.pop %v2075
    %v2104 = vmul.f32 %v2017, %v2103
    %v2105 = vrcp.pop %v2076
    %v2106 = vmul.f32 %v2020, %v2105
    %v2107 = vrcp.pop %v2077
    %v2108 = vmul.f32 %v2025, %v2107
    %v2109 = vrcp.pop %v2078
    %v2110 = vmul.f32 %v2028, %v2109
    %v2111 = vadd.f32 %v1373, %v2080
    %v2112 = vadd.f32 %v1374, %v2082
    %v2113 = vadd.f32 %v1375, %v2084
    %v2114 = vadd.f32 %v1376, %v2086
    %v2115 = vadd.f32 %v1377, %v2088
    %v2116 = vadd.f32 %v1378, %v2090
    %v2117 = vadd.f32 %v1379, %v2092
    %v2118 = vadd.f32 %v1380, %v2094
    %v2119 = vadd.f32 %v1381, %v2096
    %v2120 = vadd.f32 %v1382, %v2098
    %v2121 = vadd.f32 %v1383, %v2100
    %v2122 = vadd.f32 %v1384, %v2102
    %v2123 = vadd.f32 %v1385, %v2104
    %v2124 = vadd.f32 %v1386, %v2106
    %v2125 = vadd.f32 %v1387, %v2108
    %v2126 = vadd.f32 %v1388, %v2110
    %v2127 = vmul.f32 %v2080, 1.442695
    %v2128 = vpow.pop %v2127
    %v2129 = vmul.f32 %v2082, 1.442695
    %v2130 = vpow.pop %v2129
    %v2131 = vmul.f32 %v2084, 1.442695
    %v2132 = vpow.pop %v2131
    %v2133 = vmul.f32 %v2086, 1.442695
    %v2134 = vpow.pop %v2133
    %v2135 = vmul.f32 %v2088, 1.442695
    %v2136 = vpow.pop %v2135
    %v2137 = vmul.f32 %v2090, 1.442695
    %v2138 = vpow.pop %v2137
    %v2139 = vmul.f32 %v2092, 1.442695
    %v2140 = vpow.pop %v2139
    %v2141 = vmul.f32 %v2094, 1.442695
    %v2142 = vpow.pop %v2141
    %v2143 = vmul.f32 %v2096, 1.442695
    %v2144 = vpow.pop %v2143
    %v2145 = vmul.f32 %v2098, 1.442695
    %v2146 = vpow.pop %v2145
    %v2147 = vmul.f32 %v2100, 1.442695
    %v2148 = vpow.pop %v2147
    %v2149 = vmul.f32 %v2102, 1.442695
    %v2150 = vpow.pop %v2149
    %v2151 = vmul.f32 %v2104, 1.442695
    %v2152 = vpow.pop %v2151
    %v2153 = vmul.f32 %v2106, 1.442695
    %v2154 = vpow.pop %v2153
    %v2155 = vmul.f32 %v2108, 1.442695
    %v2156 = vpow.pop %v2155
    %v2157 = vmul.f32 %v2110, 1.442695
    %v2158 = vpow.pop %v2157
    %2175 = vrot.lane.b32.xlu0 %v2128, 120
    %v2176 = vpop.permute.xlu0 %2175
    %2177 = vrot.lane.b32.xlu0 %v2130, 120
    %v2178 = vpop.permute.xlu0 %2177
    %2179 = vrot.lane.b32.xlu0 %v2132, 120
    %v2180 = vpop.permute.xlu0 %2179
    %2181 = vrot.lane.b32.xlu0 %v2134, 120
    %v2182 = vpop.permute.xlu0 %2181
    %2183 = vrot.lane.b32.xlu0 %v2136, 120
    %v2184 = vpop.permute.xlu0 %2183
    %2185 = vrot.lane.b32.xlu0 %v2138, 120
    %v2186 = vpop.permute.xlu0 %2185
    %2187 = vrot.lane.b32.xlu0 %v2140, 120
    %v2188 = vpop.permute.xlu0 %2187
    %2189 = vrot.lane.b32.xlu0 %v2142, 120
    %v2190 = vpop.permute.xlu0 %2189
    %2191 = vrot.lane.b32.xlu0 %v2144, 120
    %v2192 = vpop.permute.xlu0 %2191
    %2193 = vrot.lane.b32.xlu0 %v2146, 120
    %v2194 = vpop.permute.xlu0 %2193
    %2195 = vrot.lane.b32.xlu0 %v2148, 120
    %v2196 = vpop.permute.xlu0 %2195
    %2197 = vrot.lane.b32.xlu0 %v2150, 120
    %v2198 = vpop.permute.xlu0 %2197
    %2199 = vrot.lane.b32.xlu0 %v2152, 120
    %v2200 = vpop.permute.xlu0 %2199
    %2201 = vrot.lane.b32.xlu0 %v2154, 120
    %v2202 = vpop.permute.xlu0 %2201
    %2203 = vrot.lane.b32.xlu0 %v2156, 120
    %v2204 = vpop.permute.xlu0 %2203
    %2205 = vrot.lane.b32.xlu0 %v2158, 120
    %v2206 = vpop.permute.xlu0 %2205
    %v2223 = vmul.f32 %v1501, %v2176
    %v2224 = vmul.f32 %v1502, %v2178
    %v2225 = vmul.f32 %v1503, %v2180
    %v2226 = vmul.f32 %v1504, %v2182
    %v2227 = vmul.f32 %v1505, %v2184
    %v2228 = vmul.f32 %v1506, %v2186
    %v2229 = vmul.f32 %v1507, %v2188
    %v2230 = vmul.f32 %v1508, %v2190
    %v2231 = vmul.f32 %v1509, %v2192
    %v2232 = vmul.f32 %v1510, %v2194
    %v2233 = vmul.f32 %v1511, %v2196
    %v2234 = vmul.f32 %v1512, %v2198
    %v2235 = vmul.f32 %v1513, %v2200
    %v2236 = vmul.f32 %v1514, %v2202
    %v2237 = vmul.f32 %v1515, %v2204
    %v2238 = vmul.f32 %v1516, %v2206
    %v2239 = vadd.f32 %v2223, %v1969
    %v2240 = vadd.f32 %v2224, %v1972
    %v2241 = vadd.f32 %v2225, %v1977
    %v2242 = vadd.f32 %v2226, %v1980
    %v2243 = vadd.f32 %v2227, %v1985
    %v2244 = vadd.f32 %v2228, %v1988
    %v2245 = vadd.f32 %v2229, %v1993
    %v2246 = vadd.f32 %v2230, %v1996
    %v2247 = vadd.f32 %v2231, %v2001
    %v2248 = vadd.f32 %v2232, %v2004
    %v2249 = vadd.f32 %v2233, %v2009
    %v2250 = vadd.f32 %v2234, %v2012
    %v2251 = vadd.f32 %v2235, %v2017
    %v2252 = vadd.f32 %v2236, %v2020
    %v2253 = vadd.f32 %v2237, %v2025
    %v2254 = vadd.f32 %v2238, %v2028
    %v2255 = vlaneseq
    %v2256 = vand.u32 %v2255, 127
    %vm2257 = vcmp.lt.s32.totalorder %v2256, 3
    %v2258 = vmul.f32 %v2239, -0.5
    %v2259 = vmul.f32 %v2240, -0.5
    %v2260 = vmul.f32 %v2241, -0.5
    %v2261 = vmul.f32 %v2242, -0.5
    %v2262 = vmul.f32 %v2243, -0.5
    %v2263 = vmul.f32 %v2244, -0.5
    %v2264 = vmul.f32 %v2245, -0.5
    %v2265 = vmul.f32 %v2246, -0.5
    %v2266 = vmul.f32 %v2247, -0.5
    %v2267 = vmul.f32 %v2248, -0.5
    %v2268 = vmul.f32 %v2249, -0.5
    %v2269 = vmul.f32 %v2250, -0.5
    %v2270 = vmul.f32 %v2251, -0.5
    %v2271 = vmul.f32 %v2252, -0.5
    %v2272 = vmul.f32 %v2253, -0.5
    %v2273 = vmul.f32 %v2254, -0.5
    %v2274 = vmul.f32 %v2258, %v2239
    %v2275 = vmul.f32 %v2259, %v2240
    %v2276 = vmul.f32 %v2260, %v2241
    %v2277 = vmul.f32 %v2261, %v2242
    %v2278 = vmul.f32 %v2262, %v2243
    %v2279 = vmul.f32 %v2263, %v2244
    %v2280 = vmul.f32 %v2264, %v2245
    %v2281 = vmul.f32 %v2265, %v2246
    %v2282 = vmul.f32 %v2266, %v2247
    %v2283 = vmul.f32 %v2267, %v2248
    %v2284 = vmul.f32 %v2268, %v2249
    %v2285 = vmul.f32 %v2269, %v2250
    %v2286 = vmul.f32 %v2270, %v2251
    %v2287 = vmul.f32 %v2271, %v2252
    %v2288 = vmul.f32 %v2272, %v2253
    %v2289 = vmul.f32 %v2273, %v2254
    %v2290 = vsub.f32 %v2274, 0.9189385
    %v2291 = vsub.f32 %v2275, 0.9189385
    %v2292 = vsub.f32 %v2276, 0.9189385
    %v2293 = vsub.f32 %v2277, 0.9189385
    %v2294 = vsub.f32 %v2278, 0.9189385
    %v2295 = vsub.f32 %v2279, 0.9189385
    %v2296 = vsub.f32 %v2280, 0.9189385
    %v2297 = vsub.f32 %v2281, 0.9189385
    %v2298 = vsub.f32 %v2282, 0.9189385
    %v2299 = vsub.f32 %v2283, 0.9189385
    %v2300 = vsub.f32 %v2284, 0.9189385
    %v2301 = vsub.f32 %v2285, 0.9189385
    %v2302 = vsub.f32 %v2286, 0.9189385
    %v2303 = vsub.f32 %v2287, 0.9189385
    %v2304 = vsub.f32 %v2288, 0.9189385
    %v2305 = vsub.f32 %v2289, 0.9189385
    %2322 = vrot.lane.b32.xlu0 %v2111, 120
    %v2323 = vpop.permute.xlu0 %2322
    %2324 = vrot.lane.b32.xlu0 %v2112, 120
    %v2325 = vpop.permute.xlu0 %2324
    %2326 = vrot.lane.b32.xlu0 %v2113, 120
    %v2327 = vpop.permute.xlu0 %2326
    %2328 = vrot.lane.b32.xlu0 %v2114, 120
    %v2329 = vpop.permute.xlu0 %2328
    %2330 = vrot.lane.b32.xlu0 %v2115, 120
    %v2331 = vpop.permute.xlu0 %2330
    %2332 = vrot.lane.b32.xlu0 %v2116, 120
    %v2333 = vpop.permute.xlu0 %2332
    %2334 = vrot.lane.b32.xlu0 %v2117, 120
    %v2335 = vpop.permute.xlu0 %2334
    %2336 = vrot.lane.b32.xlu0 %v2118, 120
    %v2337 = vpop.permute.xlu0 %2336
    %2338 = vrot.lane.b32.xlu0 %v2119, 120
    %v2339 = vpop.permute.xlu0 %2338
    %2340 = vrot.lane.b32.xlu0 %v2120, 120
    %v2341 = vpop.permute.xlu0 %2340
    %2342 = vrot.lane.b32.xlu0 %v2121, 120
    %v2343 = vpop.permute.xlu0 %2342
    %2344 = vrot.lane.b32.xlu0 %v2122, 120
    %v2345 = vpop.permute.xlu0 %2344
    %2346 = vrot.lane.b32.xlu0 %v2123, 120
    %v2347 = vpop.permute.xlu0 %2346
    %2348 = vrot.lane.b32.xlu0 %v2124, 120
    %v2349 = vpop.permute.xlu0 %2348
    %2350 = vrot.lane.b32.xlu0 %v2125, 120
    %v2351 = vpop.permute.xlu0 %2350
    %2352 = vrot.lane.b32.xlu0 %v2126, 120
    %v2353 = vpop.permute.xlu0 %2352
    %v2370 = vadd.f32 %v2290, %v2323
    %v2371 = vadd.f32 %v2291, %v2325
    %v2372 = vadd.f32 %v2292, %v2327
    %v2373 = vadd.f32 %v2293, %v2329
    %v2374 = vadd.f32 %v2294, %v2331
    %v2375 = vadd.f32 %v2295, %v2333
    %v2376 = vadd.f32 %v2296, %v2335
    %v2377 = vadd.f32 %v2297, %v2337
    %v2378 = vadd.f32 %v2298, %v2339
    %v2379 = vadd.f32 %v2299, %v2341
    %v2380 = vadd.f32 %v2300, %v2343
    %v2381 = vadd.f32 %v2301, %v2345
    %v2382 = vadd.f32 %v2302, %v2347
    %v2383 = vadd.f32 %v2303, %v2349
    %v2384 = vadd.f32 %v2304, %v2351
    %v2385 = vadd.f32 %v2305, %v2353
    %v2386 = vsel %vm2257, %v2370, 0.0
    %v2387 = vsel %vm2257, %v2371, 0.0
    %v2388 = vsel %vm2257, %v2372, 0.0
    %v2389 = vsel %vm2257, %v2373, 0.0
    %v2390 = vsel %vm2257, %v2374, 0.0
    %v2391 = vsel %vm2257, %v2375, 0.0
    %v2392 = vsel %vm2257, %v2376, 0.0
    %v2393 = vsel %vm2257, %v2377, 0.0
    %v2394 = vsel %vm2257, %v2378, 0.0
    %v2395 = vsel %vm2257, %v2379, 0.0
    %v2396 = vsel %vm2257, %v2380, 0.0
    %v2397 = vsel %vm2257, %v2381, 0.0
    %v2398 = vsel %vm2257, %v2382, 0.0
    %v2399 = vsel %vm2257, %v2383, 0.0
    %v2400 = vsel %vm2257, %v2384, 0.0
    %v2401 = vsel %vm2257, %v2385, 0.0
    %v2402 = vsel %vm60, %v2386, 0.0
    %2403 = vadd.xlane.f32.xlu0 %v2402
    %v2404 = vpop.xlane.xlu0 %2403
    %v2405 = vsel %vm60, %v2387, 0.0
    %2406 = vadd.xlane.f32.xlu0 %v2405
    %v2407 = vpop.xlane.xlu0 %2406
    %v2408 = vsel %vm60, %v2388, 0.0
    %2409 = vadd.xlane.f32.xlu0 %v2408
    %v2410 = vpop.xlane.xlu0 %2409
    %v2411 = vsel %vm60, %v2389, 0.0
    %2412 = vadd.xlane.f32.xlu0 %v2411
    %v2413 = vpop.xlane.xlu0 %2412
    %v2414 = vsel %vm60, %v2390, 0.0
    %2415 = vadd.xlane.f32.xlu0 %v2414
    %v2416 = vpop.xlane.xlu0 %2415
    %v2417 = vsel %vm60, %v2391, 0.0
    %2418 = vadd.xlane.f32.xlu0 %v2417
    %v2419 = vpop.xlane.xlu0 %2418
    %v2420 = vsel %vm60, %v2392, 0.0
    %2421 = vadd.xlane.f32.xlu0 %v2420
    %v2422 = vpop.xlane.xlu0 %2421
    %v2423 = vsel %vm60, %v2393, 0.0
    %2424 = vadd.xlane.f32.xlu0 %v2423
    %v2425 = vpop.xlane.xlu0 %2424
    %v2426 = vsel %vm60, %v2394, 0.0
    %2427 = vadd.xlane.f32.xlu0 %v2426
    %v2428 = vpop.xlane.xlu0 %2427
    %v2429 = vsel %vm60, %v2395, 0.0
    %2430 = vadd.xlane.f32.xlu0 %v2429
    %v2431 = vpop.xlane.xlu0 %2430
    %v2432 = vsel %vm60, %v2396, 0.0
    %2433 = vadd.xlane.f32.xlu0 %v2432
    %v2434 = vpop.xlane.xlu0 %2433
    %v2435 = vsel %vm60, %v2397, 0.0
    %2436 = vadd.xlane.f32.xlu0 %v2435
    %v2437 = vpop.xlane.xlu0 %2436
    %v2438 = vsel %vm60, %v2398, 0.0
    %2439 = vadd.xlane.f32.xlu0 %v2438
    %v2440 = vpop.xlane.xlu0 %2439
    %v2441 = vsel %vm60, %v2399, 0.0
    %2442 = vadd.xlane.f32.xlu0 %v2441
    %v2443 = vpop.xlane.xlu0 %2442
    %v2444 = vsel %vm60, %v2400, 0.0
    %2445 = vadd.xlane.f32.xlu0 %v2444
    %v2446 = vpop.xlane.xlu0 %2445
    %v2447 = vsel %vm60, %v2401, 0.0
    %2448 = vadd.xlane.f32.xlu0 %v2447
    %v2449 = vpop.xlane.xlu0 %2448
    %v2466 = vlaneseq
    %v2467 = vshrl.u32 %v2466, 7
    %v2468 = vsub.s32 %v2256, %v2467
    %v2469 = vrot.slane %v2404, %v2468
    %v2470 = vadd.s32 %v2256, 4294967288
    %v2471 = vlaneseq
    %v2472 = vshrl.u32 %v2471, 7
    %v2473 = vsub.s32 %v2470, %v2472
    %v2474 = vrot.slane %v2407, %v2473
    %vm2475 = vcmask 130112
    %v2476 = vsel %vm2475, %v2474, %v2469
    %v2477 = vadd.s32 %v2256, 4294967280
    %v2478 = vlaneseq
    %v2479 = vshrl.u32 %v2478, 7
    %v2480 = vsub.s32 %v2477, %v2479
    %v2481 = vrot.slane %v2410, %v2480
    %vm2482 = vcmask 195712
    %v2483 = vsel %vm2482, %v2481, %v2476
    %v2484 = vadd.s32 %v2256, 4294967272
    %v2485 = vlaneseq
    %v2486 = vshrl.u32 %v2485, 7
    %v2487 = vsub.s32 %v2484, %v2486
    %v2488 = vrot.slane %v2413, %v2487
    %vm2489 = vcmask 261312
    %v2490 = vsel %vm2489, %v2488, %v2483
    %v2491 = vadd.s32 %v2256, 4294967264
    %v2492 = vlaneseq
    %v2493 = vshrl.u32 %v2492, 7
    %v2494 = vsub.s32 %v2491, %v2493
    %v2495 = vrot.slane %v2416, %v2494
    %vm2496 = vcmask 326912
    %v2497 = vsel %vm2496, %v2495, %v2490
    %v2498 = vadd.s32 %v2256, 4294967256
    %v2499 = vlaneseq
    %v2500 = vshrl.u32 %v2499, 7
    %v2501 = vsub.s32 %v2498, %v2500
    %v2502 = vrot.slane %v2419, %v2501
    %vm2503 = vcmask 392512
    %v2504 = vsel %vm2503, %v2502, %v2497
    %v2505 = vadd.s32 %v2256, 4294967248
    %v2506 = vlaneseq
    %v2507 = vshrl.u32 %v2506, 7
    %v2508 = vsub.s32 %v2505, %v2507
    %v2509 = vrot.slane %v2422, %v2508
    %vm2510 = vcmask 458112
    %v2511 = vsel %vm2510, %v2509, %v2504
    %v2512 = vadd.s32 %v2256, 4294967240
    %v2513 = vlaneseq
    %v2514 = vshrl.u32 %v2513, 7
    %v2515 = vsub.s32 %v2512, %v2514
    %v2516 = vrot.slane %v2425, %v2515
    %vm2517 = vcmask 523712
    %v2518 = vsel %vm2517, %v2516, %v2511
    %v2519 = vadd.s32 %v2256, 4294967232
    %v2520 = vlaneseq
    %v2521 = vshrl.u32 %v2520, 7
    %v2522 = vsub.s32 %v2519, %v2521
    %v2523 = vrot.slane %v2428, %v2522
    %vm2524 = vcmask 589312
    %v2525 = vsel %vm2524, %v2523, %v2518
    %v2526 = vadd.s32 %v2256, 4294967224
    %v2527 = vlaneseq
    %v2528 = vshrl.u32 %v2527, 7
    %v2529 = vsub.s32 %v2526, %v2528
    %v2530 = vrot.slane %v2431, %v2529
    %vm2531 = vcmask 654912
    %v2532 = vsel %vm2531, %v2530, %v2525
    %v2533 = vadd.s32 %v2256, 4294967216
    %v2534 = vlaneseq
    %v2535 = vshrl.u32 %v2534, 7
    %v2536 = vsub.s32 %v2533, %v2535
    %v2537 = vrot.slane %v2434, %v2536
    %vm2538 = vcmask 720512
    %v2539 = vsel %vm2538, %v2537, %v2532
    %v2540 = vadd.s32 %v2256, 4294967208
    %v2541 = vlaneseq
    %v2542 = vshrl.u32 %v2541, 7
    %v2543 = vsub.s32 %v2540, %v2542
    %v2544 = vrot.slane %v2437, %v2543
    %vm2545 = vcmask 786112
    %v2546 = vsel %vm2545, %v2544, %v2539
    %v2547 = vadd.s32 %v2256, 4294967200
    %v2548 = vlaneseq
    %v2549 = vshrl.u32 %v2548, 7
    %v2550 = vsub.s32 %v2547, %v2549
    %v2551 = vrot.slane %v2440, %v2550
    %vm2552 = vcmask 851712
    %v2553 = vsel %vm2552, %v2551, %v2546
    %v2554 = vadd.s32 %v2256, 4294967192
    %v2555 = vlaneseq
    %v2556 = vshrl.u32 %v2555, 7
    %v2557 = vsub.s32 %v2554, %v2556
    %v2558 = vrot.slane %v2443, %v2557
    %vm2559 = vcmask 917312
    %v2560 = vsel %vm2559, %v2558, %v2553
    %v2561 = vadd.s32 %v2256, 4294967184
    %v2562 = vlaneseq
    %v2563 = vshrl.u32 %v2562, 7
    %v2564 = vsub.s32 %v2561, %v2563
    %v2565 = vrot.slane %v2446, %v2564
    %vm2566 = vcmask 982912
    %v2567 = vsel %vm2566, %v2565, %v2560
    %v2568 = vadd.s32 %v2256, 4294967176
    %v2569 = vlaneseq
    %v2570 = vshrl.u32 %v2569, 7
    %v2571 = vsub.s32 %v2568, %v2570
    %v2572 = vrot.slane %v2449, %v2571
    %vm2573 = vcmask 1048512
    %v2574 = vsel %vm2573, %v2572, %v2567
    %2576 = vst [vmem:[#allocation2] sm:$0x1] %v2574
    // Predicated region
    $region30: #{_pallas_log_prob.1} parent=1 // pred_check
      _
    $region31: #{_pallas_log_prob.1} parent=1 // pred_check_branch
      %2578 = sbr.rel (0) target = $region33
    $region32: #{_pallas_log_prob.1} parent=1 // pred_region
      %s2580 = ssub.s32 16, 16
      %2581 = vsyncadd [#allocation3], %s2580
      %s2583 = sshll.u32 [#allocation2], 4
      %s2584 = int_to_ptr.vmem [resolvable:$true] %s2583
      %2586 = dma.vmem_to_hbm [thread:$0]  %s2584, 16, %s7, [#allocation3]
    $region33: #{_pallas_log_prob.1} parent=1 // pred_fallthru
      _
    // Predicated region
    $region34: #{_pallas_log_prob.1} parent=1 // pred_check
      _
    $region35: #{_pallas_log_prob.1} parent=1 // pred_check_branch
      %2588 = sbr.rel (0) target = $region37
    $region36: #{_pallas_log_prob.1} parent=1 // pred_region
      %2589 = dma.done [#allocation3], 16
    $region37: #{_pallas_log_prob.1} parent=1 // pred_fallthru
      _
    %2590 = vsyncpa [#allocation3], 1

</llo_original>
